<compile_context>
chip_gen: v6e
topology: v6e:2x2x1
jax: 0.10.0
libtpu: 0.0.40
codegen_flags: <defaults>
</compile_context>

<pallas_src>
import math
import functools

import jax
import jax.numpy as jnp
from jax.experimental import pallas as pl
from jax.experimental.pallas import tpu as pltpu


def _to_gray_kernel(x_ref, w_ref, o_ref):
    """Fused 3x3 conv (C_in -> 1, pad=1, no bias) + Sigmoid for one image.

    x_ref: (1, H+2, W+2, C)  bf16  zero-padded NHWC activation
    w_ref: (9, 1, 1, C)      f32   conv weights, tap t = dy*3 + dx
    o_ref: (1, H, W, 1)      f32   sigmoid(conv) output
    """
    h = o_ref.shape[1]
    w = o_ref.shape[2]
    c = x_ref.shape[3]

    # Accumulate the 9 shifted taps on the VPU in f32.
    acc = jnp.zeros((h, w, c), jnp.float32)
    for dy in range(3):
        for dx in range(3):
            tap = x_ref[0, dy:dy + h, dx:dx + w, :].astype(jnp.float32)  # (H, W, C)
            acc = acc + tap * w_ref[dy * 3 + dx]                         # bcast (1,1,C)

    # Contract over the channel (lane) axis, then Sigmoid.
    conv = jnp.sum(acc, axis=-1, keepdims=True)      # (H, W, 1), f32
    o_ref[0] = 1.0 / (1.0 + jnp.exp(-conv))          # Sigmoid


def to_gray_forward(h_code_nchw, weight_ochw):
    """h_code_nchw: (N, C, H, W) f32 (PyTorch layout).
    weight_ochw:   (1, C, 3, 3) f32 (PyTorch Conv2d weight, bias=False).
    Returns (N, 1, H, W) f32, matching TO_GRAY_LAYER.forward.
    """
    n, c, h, w = h_code_nchw.shape

    # NCHW -> NHWC, cast to bf16 for the DMA, zero-pad spatially by 1 (padding=1).
    x = jnp.transpose(h_code_nchw, (0, 2, 3, 1)).astype(jnp.bfloat16)
    x = jnp.pad(x, ((0, 0), (1, 1), (1, 1), (0, 0)))                 # (N, H+2, W+2, C)

    # (1, C, 3, 3) -> (1, 3, 3, C) -> (9, 1, 1, C): tap t = dy*3 + dx, channels on lanes.
    w_taps = jnp.transpose(weight_ochw, (0, 2, 3, 1)).reshape(9, 1, 1, c)
    w_taps = w_taps.astype(jnp.float32)

    out_nhwc1 = pl.pallas_call(
        _to_gray_kernel,
        out_shape=jax.ShapeDtypeStruct((n, h, w, 1), jnp.float32),
        grid=(n,),
        in_specs=[
            pl.BlockSpec((1, h + 2, w + 2, c), lambda i: (i, 0, 0, 0)),
            pl.BlockSpec((9, 1, 1, c), lambda i: (0, 0, 0, 0)),
        ],
        out_specs=pl.BlockSpec((1, h, w, 1), lambda i: (i, 0, 0, 0)),
        compiler_params=pltpu.CompilerParams(
            dimension_semantics=("parallel",),
        ),
    )(x, w_taps)

    # (N, H, W, 1) -> (N, 1, H, W) to match the PyTorch output layout.
    return jnp.transpose(out_nhwc1, (0, 3, 1, 2))


if __name__ == "__main__":
    NGF = 64          # self.gf_dim
    N, H, W = 2, 16, 16

    key = jax.random.PRNGKey(0)
    kx, kw = jax.random.split(key)

    h_code = jax.random.normal(kx, (N, NGF, H, W), jnp.float32)            # NCHW
    fan_in = NGF * 3 * 3
    weight = jax.random.normal(kw, (1, NGF, 3, 3), jnp.float32) / math.sqrt(fan_in)

    fwd = jax.jit(to_gray_forward)
    out = fwd(h_code, weight)
    jax.block_until_ready(out)

    # Pure-JAX reference (same bf16-rounded activations, f32 math).
    x_ref = jnp.transpose(h_code, (0, 2, 3, 1)).astype(jnp.bfloat16).astype(jnp.float32)
    w_hwio = jnp.transpose(weight, (2, 3, 1, 0))                           # (3,3,C,1)
    ref = jax.lax.conv_general_dilated(
        x_ref, w_hwio, window_strides=(1, 1), padding="SAME",
        dimension_numbers=("NHWC", "HWIO", "NHWC"),
        precision=jax.lax.Precision.HIGHEST)
    ref = jnp.transpose(jax.nn.sigmoid(ref), (0, 3, 1, 2))                 # (N,1,H,W)

    assert out.shape == (N, 1, H, W)
    assert bool(jnp.all(jnp.isfinite(out)))
    assert bool(jnp.allclose(out, ref, atol=2e-3, rtol=2e-3))
    print("KERNEL_OK")
</pallas_src>

<mosaic_0001>
module attributes {stable_mosaic.version = 11 : i64} {
  func.func @_to_gray_kernel(%arg0: i32, %arg1: memref<1x18x18x64xbf16, #tpu.memory_space<vmem>>, %arg2: memref<9x1x1x64xf32, #tpu.memory_space<vmem>>, %arg3: memref<1x16x16x1xf32, #tpu.memory_space<vmem>>) attributes {dimension_semantics = [#tpu.dimension_semantics<parallel>], iteration_bounds = array<i64: 2>, scalar_prefetch = 0 : i64, scratch_operands = 0 : i64, tpu.core_type = #tpu.core_type<tc>, window_params = [{transform_indices = @transform_0, window_bounds = array<i64: 1, 18, 18, 64>}, {pipeline_mode = #tpu.pipeline_mode<synchronous>, transform_indices = @transform_1, window_bounds = array<i64: 9, 1, 1, 64>}, {transform_indices = @transform_2, window_bounds = array<i64: 1, 16, 16, 1>}]} {
    %cst = arith.constant 0.000000e+00 : f32
    %0 = vector.broadcast %cst : f32 to vector<16x16x64xf32>
    %c0 = arith.constant 0 : index
    %c0_0 = arith.constant 0 : index
    %c0_1 = arith.constant 0 : index
    %c0_2 = arith.constant 0 : index
    %1 = vector.load %arg1[%c0, %c0_0, %c0_1, %c0_2] : memref<1x18x18x64xbf16, #tpu.memory_space<vmem>>, vector<1x16x16x64xbf16>
    %2 = vector.shape_cast %1 : vector<1x16x16x64xbf16> to vector<16x16x64xbf16>
    %3 = arith.extf %2 : vector<16x16x64xbf16> to vector<16x16x64xf32>
    %c0_3 = arith.constant 0 : index
    %c0_4 = arith.constant 0 : index
    %c0_5 = arith.constant 0 : index
    %c0_6 = arith.constant 0 : index
    %4 = vector.load %arg2[%c0_3, %c0_4, %c0_5, %c0_6] : memref<9x1x1x64xf32, #tpu.memory_space<vmem>>, vector<1x1x1x64xf32>
    %5 = vector.shape_cast %4 : vector<1x1x1x64xf32> to vector<1x1x64xf32>
    %6 = vector.broadcast %5 : vector<1x1x64xf32> to vector<16x16x64xf32>
    %7 = arith.mulf %3, %6 : vector<16x16x64xf32>
    %8 = arith.addf %0, %7 : vector<16x16x64xf32>
    %c0_7 = arith.constant 0 : index
    %c0_8 = arith.constant 0 : index
    %c1 = arith.constant 1 : index
    %c0_9 = arith.constant 0 : index
    %9 = vector.load %arg1[%c0_7, %c0_8, %c1, %c0_9] : memref<1x18x18x64xbf16, #tpu.memory_space<vmem>>, vector<1x16x16x64xbf16>
    %10 = vector.shape_cast %9 : vector<1x16x16x64xbf16> to vector<16x16x64xbf16>
    %11 = arith.extf %10 : vector<16x16x64xbf16> to vector<16x16x64xf32>
    %c1_10 = arith.constant 1 : index
    %c0_11 = arith.constant 0 : index
    %c0_12 = arith.constant 0 : index
    %c0_13 = arith.constant 0 : index
    %12 = vector.load %arg2[%c1_10, %c0_11, %c0_12, %c0_13] : memref<9x1x1x64xf32, #tpu.memory_space<vmem>>, vector<1x1x1x64xf32>
    %13 = vector.shape_cast %12 : vector<1x1x1x64xf32> to vector<1x1x64xf32>
    %14 = vector.broadcast %13 : vector<1x1x64xf32> to vector<16x16x64xf32>
    %15 = arith.mulf %11, %14 : vector<16x16x64xf32>
    %16 = arith.addf %8, %15 : vector<16x16x64xf32>
    %c0_14 = arith.constant 0 : index
    %c0_15 = arith.constant 0 : index
    %c2 = arith.constant 2 : index
    %c0_16 = arith.constant 0 : index
    %17 = vector.load %arg1[%c0_14, %c0_15, %c2, %c0_16] : memref<1x18x18x64xbf16, #tpu.memory_space<vmem>>, vector<1x16x16x64xbf16>
    %18 = vector.shape_cast %17 : vector<1x16x16x64xbf16> to vector<16x16x64xbf16>
    %19 = arith.extf %18 : vector<16x16x64xbf16> to vector<16x16x64xf32>
    %c2_17 = arith.constant 2 : index
    %c0_18 = arith.constant 0 : index
    %c0_19 = arith.constant 0 : index
    %c0_20 = arith.constant 0 : index
    %20 = vector.load %arg2[%c2_17, %c0_18, %c0_19, %c0_20] : memref<9x1x1x64xf32, #tpu.memory_space<vmem>>, vector<1x1x1x64xf32>
    %21 = vector.shape_cast %20 : vector<1x1x1x64xf32> to vector<1x1x64xf32>
    %22 = vector.broadcast %21 : vector<1x1x64xf32> to vector<16x16x64xf32>
    %23 = arith.mulf %19, %22 : vector<16x16x64xf32>
    %24 = arith.addf %16, %23 : vector<16x16x64xf32>
    %c0_21 = arith.constant 0 : index
    %c1_22 = arith.constant 1 : index
    %c0_23 = arith.constant 0 : index
    %c0_24 = arith.constant 0 : index
    %25 = vector.load %arg1[%c0_21, %c1_22, %c0_23, %c0_24] : memref<1x18x18x64xbf16, #tpu.memory_space<vmem>>, vector<1x16x16x64xbf16>
    %26 = vector.shape_cast %25 : vector<1x16x16x64xbf16> to vector<16x16x64xbf16>
    %27 = arith.extf %26 : vector<16x16x64xbf16> to vector<16x16x64xf32>
    %c3 = arith.constant 3 : index
    %c0_25 = arith.constant 0 : index
    %c0_26 = arith.constant 0 : index
    %c0_27 = arith.constant 0 : index
    %28 = vector.load %arg2[%c3, %c0_25, %c0_26, %c0_27] : memref<9x1x1x64xf32, #tpu.memory_space<vmem>>, vector<1x1x1x64xf32>
    %29 = vector.shape_cast %28 : vector<1x1x1x64xf32> to vector<1x1x64xf32>
    %30 = vector.broadcast %29 : vector<1x1x64xf32> to vector<16x16x64xf32>
    %31 = arith.mulf %27, %30 : vector<16x16x64xf32>
    %32 = arith.addf %24, %31 : vector<16x16x64xf32>
    %c0_28 = arith.constant 0 : index
    %c1_29 = arith.constant 1 : index
    %c1_30 = arith.constant 1 : index
    %c0_31 = arith.constant 0 : index
    %33 = vector.load %arg1[%c0_28, %c1_29, %c1_30, %c0_31] : memref<1x18x18x64xbf16, #tpu.memory_space<vmem>>, vector<1x16x16x64xbf16>
    %34 = vector.shape_cast %33 : vector<1x16x16x64xbf16> to vector<16x16x64xbf16>
    %35 = arith.extf %34 : vector<16x16x64xbf16> to vector<16x16x64xf32>
    %c4 = arith.constant 4 : index
    %c0_32 = arith.constant 0 : index
    %c0_33 = arith.constant 0 : index
    %c0_34 = arith.constant 0 : index
    %36 = vector.load %arg2[%c4, %c0_32, %c0_33, %c0_34] : memref<9x1x1x64xf32, #tpu.memory_space<vmem>>, vector<1x1x1x64xf32>
    %37 = vector.shape_cast %36 : vector<1x1x1x64xf32> to vector<1x1x64xf32>
    %38 = vector.broadcast %37 : vector<1x1x64xf32> to vector<16x16x64xf32>
    %39 = arith.mulf %35, %38 : vector<16x16x64xf32>
    %40 = arith.addf %32, %39 : vector<16x16x64xf32>
    %c0_35 = arith.constant 0 : index
    %c1_36 = arith.constant 1 : index
    %c2_37 = arith.constant 2 : index
    %c0_38 = arith.constant 0 : index
    %41 = vector.load %arg1[%c0_35, %c1_36, %c2_37, %c0_38] : memref<1x18x18x64xbf16, #tpu.memory_space<vmem>>, vector<1x16x16x64xbf16>
    %42 = vector.shape_cast %41 : vector<1x16x16x64xbf16> to vector<16x16x64xbf16>
    %43 = arith.extf %42 : vector<16x16x64xbf16> to vector<16x16x64xf32>
    %c5 = arith.constant 5 : index
    %c0_39 = arith.constant 0 : index
    %c0_40 = arith.constant 0 : index
    %c0_41 = arith.constant 0 : index
    %44 = vector.load %arg2[%c5, %c0_39, %c0_40, %c0_41] : memref<9x1x1x64xf32, #tpu.memory_space<vmem>>, vector<1x1x1x64xf32>
    %45 = vector.shape_cast %44 : vector<1x1x1x64xf32> to vector<1x1x64xf32>
    %46 = vector.broadcast %45 : vector<1x1x64xf32> to vector<16x16x64xf32>
    %47 = arith.mulf %43, %46 : vector<16x16x64xf32>
    %48 = arith.addf %40, %47 : vector<16x16x64xf32>
    %c0_42 = arith.constant 0 : index
    %c2_43 = arith.constant 2 : index
    %c0_44 = arith.constant 0 : index
    %c0_45 = arith.constant 0 : index
    %49 = vector.load %arg1[%c0_42, %c2_43, %c0_44, %c0_45] : memref<1x18x18x64xbf16, #tpu.memory_space<vmem>>, vector<1x16x16x64xbf16>
    %50 = vector.shape_cast %49 : vector<1x16x16x64xbf16> to vector<16x16x64xbf16>
    %51 = arith.extf %50 : vector<16x16x64xbf16> to vector<16x16x64xf32>
    %c6 = arith.constant 6 : index
    %c0_46 = arith.constant 0 : index
    %c0_47 = arith.constant 0 : index
    %c0_48 = arith.constant 0 : index
    %52 = vector.load %arg2[%c6, %c0_46, %c0_47, %c0_48] : memref<9x1x1x64xf32, #tpu.memory_space<vmem>>, vector<1x1x1x64xf32>
    %53 = vector.shape_cast %52 : vector<1x1x1x64xf32> to vector<1x1x64xf32>
    %54 = vector.broadcast %53 : vector<1x1x64xf32> to vector<16x16x64xf32>
    %55 = arith.mulf %51, %54 : vector<16x16x64xf32>
    %56 = arith.addf %48, %55 : vector<16x16x64xf32>
    %c0_49 = arith.constant 0 : index
    %c2_50 = arith.constant 2 : index
    %c1_51 = arith.constant 1 : index
    %c0_52 = arith.constant 0 : index
    %57 = vector.load %arg1[%c0_49, %c2_50, %c1_51, %c0_52] : memref<1x18x18x64xbf16, #tpu.memory_space<vmem>>, vector<1x16x16x64xbf16>
    %58 = vector.shape_cast %57 : vector<1x16x16x64xbf16> to vector<16x16x64xbf16>
    %59 = arith.extf %58 : vector<16x16x64xbf16> to vector<16x16x64xf32>
    %c7 = arith.constant 7 : index
    %c0_53 = arith.constant 0 : index
    %c0_54 = arith.constant 0 : index
    %c0_55 = arith.constant 0 : index
    %60 = vector.load %arg2[%c7, %c0_53, %c0_54, %c0_55] : memref<9x1x1x64xf32, #tpu.memory_space<vmem>>, vector<1x1x1x64xf32>
    %61 = vector.shape_cast %60 : vector<1x1x1x64xf32> to vector<1x1x64xf32>
    %62 = vector.broadcast %61 : vector<1x1x64xf32> to vector<16x16x64xf32>
    %63 = arith.mulf %59, %62 : vector<16x16x64xf32>
    %64 = arith.addf %56, %63 : vector<16x16x64xf32>
    %c0_56 = arith.constant 0 : index
    %c2_57 = arith.constant 2 : index
    %c2_58 = arith.constant 2 : index
    %c0_59 = arith.constant 0 : index
    %65 = vector.load %arg1[%c0_56, %c2_57, %c2_58, %c0_59] : memref<1x18x18x64xbf16, #tpu.memory_space<vmem>>, vector<1x16x16x64xbf16>
    %66 = vector.shape_cast %65 : vector<1x16x16x64xbf16> to vector<16x16x64xbf16>
    %67 = arith.extf %66 : vector<16x16x64xbf16> to vector<16x16x64xf32>
    %c8 = arith.constant 8 : index
    %c0_60 = arith.constant 0 : index
    %c0_61 = arith.constant 0 : index
    %c0_62 = arith.constant 0 : index
    %68 = vector.load %arg2[%c8, %c0_60, %c0_61, %c0_62] : memref<9x1x1x64xf32, #tpu.memory_space<vmem>>, vector<1x1x1x64xf32>
    %69 = vector.shape_cast %68 : vector<1x1x1x64xf32> to vector<1x1x64xf32>
    %70 = vector.broadcast %69 : vector<1x1x64xf32> to vector<16x16x64xf32>
    %71 = arith.mulf %67, %70 : vector<16x16x64xf32>
    %72 = arith.addf %64, %71 : vector<16x16x64xf32>
    %cst_63 = arith.constant dense<0.000000e+00> : vector<16x16xf32>
    %73 = vector.multi_reduction <add>, %72, %cst_63 [2] : vector<16x16x64xf32> to vector<16x16xf32>
    %74 = vector.shape_cast %73 : vector<16x16xf32> to vector<16x16x1xf32>
    %cst_64 = arith.constant 0.000000e+00 : f32
    %75 = vector.broadcast %cst_64 : f32 to vector<16x16x1xf32>
    %76 = arith.subf %75, %74 : vector<16x16x1xf32>
    %77 = math.exp %76 : vector<16x16x1xf32>
    %cst_65 = arith.constant 1.000000e+00 : f32
    %78 = vector.broadcast %cst_65 : f32 to vector<16x16x1xf32>
    %79 = arith.addf %78, %77 : vector<16x16x1xf32>
    %cst_66 = arith.constant 1.000000e+00 : f32
    %80 = vector.broadcast %cst_66 : f32 to vector<16x16x1xf32>
    %81 = arith.divf %80, %79 : vector<16x16x1xf32>
    %c0_67 = arith.constant 0 : index
    %c0_68 = arith.constant 0 : index
    %c0_69 = arith.constant 0 : index
    %c0_70 = arith.constant 0 : index
    %82 = vector.load %arg3[%c0_67, %c0_68, %c0_69, %c0_70] : memref<1x16x16x1xf32, #tpu.memory_space<vmem>>, vector<1x16x16x1xf32>
    %83 = vector.shape_cast %82 : vector<1x16x16x1xf32> to vector<16x16x1xf32>
    %84 = vector.shape_cast %81 : vector<16x16x1xf32> to vector<1x16x16x1xf32>
    tpu.vector_store %arg3[%c0_67, %c0_68, %c0_69, %c0_70], %84 {strides = array<i32>} : memref<1x16x16x1xf32, #tpu.memory_space<vmem>>, vector<1x16x16x1xf32>,
    return
  }
  func.func @transform_0(%arg0: i32) -> (i32, i32, i32, i32) {
    %c0_i32 = arith.constant 0 : i32
    %c0_i32_0 = arith.constant 0 : i32
    %c0_i32_1 = arith.constant 0 : i32
    %c0_i32_2 = arith.constant 0 : i32
    return %arg0, %c0_i32, %c0_i32_0, %c0_i32_1 : i32, i32, i32, i32
  }
  func.func @transform_1(%arg0: i32) -> (i32, i32, i32, i32) {
    %c0_i32 = arith.constant 0 : i32
    %c0_i32_0 = arith.constant 0 : i32
    %c0_i32_1 = arith.constant 0 : i32
    %c0_i32_2 = arith.constant 0 : i32
    %c0_i32_3 = arith.constant 0 : i32
    return %c0_i32, %c0_i32_0, %c0_i32_1, %c0_i32_2 : i32, i32, i32, i32
  }
  func.func @transform_2(%arg0: i32) -> (i32, i32, i32, i32) {
    %c0_i32 = arith.constant 0 : i32
    %c0_i32_0 = arith.constant 0 : i32
    %c0_i32_1 = arith.constant 0 : i32
    %c0_i32_2 = arith.constant 0 : i32
    return %arg0, %c0_i32, %c0_i32_0, %c0_i32_1 : i32, i32, i32, i32
  }
}

</mosaic_0001>

<llo_original>
// kernel: to_gray_forward.1
$region0: #{to_gray_forward.1}
  #allocation0 [shape = 'u32[]', space=smem, size = 0x4, offset = 0x4, fixed_abs, tag = 'smem constant byte address 0x4 - core index']
  #allocation1 [shape = 'u32[144,128]{1,0:T(1,128)}', space=vmem, size = 0x12000, scoped, tag = 'internal scratch']
  %s0 = inlined_call_operand.vmem [shape: bf16[2,18,18,64], index: 0, kind: input, shape index: {}]
  %s1 = inlined_call_operand.vmem [shape: f32[9,1,1,64], index: 1, kind: input, shape index: {}]
  %s2 = inlined_call_operand.vmem [shape: f32[2,16,16,1], index: 2, kind: output, shape index: {}]
  %s3 = sld [smem:[#allocation0]]
  $region41: #{to_gray_forward.1} parent=0
    _
  %s5 = ssub.s32 1, %s3
  %s6 = scalar_select 0, %s5, %s3
  loop: start=0, step=1, limit=4
  $region2: #{to_gray_forward.1} parent=0 // loop_pre_header
    _
  $region3: #{to_gray_forward.1} parent=0 // loop_header
    %s8 = sphi 0, %s12
    %p9 = scmp.ge.s32.totalorder %s8, 4
    %s18 = sphi 0, %s20
    %s21 = sphi 0, %s18
    %s22 = sphi 0, %s21
    %s38 = sphi 0, %s22
    %s42 = sphi 0, %s42
    %s44 = sphi 0, %s42
    %s45 = sphi 0, %s44
    %s59 = sphi 0, %s45
    %s65 = sphi 0, %s67
    %s68 = sphi 0, %s65
    %s69 = sphi 0, %s68
    %s85 = sphi 0, %s69
  $region4: #{to_gray_forward.1} parent=0 // loop_header_branch
    %11 = sbr.rel (%p9) target = $region8
  $region5: #{to_gray_forward.1} parent=0 // loop_body
    %s13 = ssub.s32 %s8, 1
    %s14 = ssub.s32 %s8, 2
    %s15 = sadd.s32 %s8, 1
    %s16 = ssub.s32 %s8, %s15
    %p17 = scmp.eq.s32.totalorder %s16, 0
    %s19 = sadd.s32 %s18, 1
    %s20 = scalar_select %p17, %s18, %s19
    %p23 = pneg %p17
    %p24 = scmp.eq.s32.totalorder %s8, 1
    %p25 = por %p23, %p24
    %p26 = scmp.ne.s32.totalorder %s18, %s21
    %p27 = scmp.eq.s32.totalorder %s8, 0
    %p28 = por %p26, %p27
    %p29 = scmp.ne.s32.totalorder %s18, %s21
    %p30 = scmp.eq.s32.totalorder %s13, 1
    %p31 = por %p29, %p30
    %p32 = scmp.ne.s32.totalorder %s21, %s22
    %p33 = scmp.eq.s32.totalorder %s13, 0
    %p34 = por %p32, %p33
    %p35 = scmp.ne.s32.totalorder %s21, %s22
    %p36 = scmp.eq.s32.totalorder %s14, 1
    %p37 = por %p35, %p36
    %p39 = scmp.ne.s32.totalorder %s22, %s38
    %p40 = scmp.eq.s32.totalorder %s14, 0
    %p41 = por %p39, %p40
    %s43 = sadd.s32 %s42, 1
    %p46 = scmp.eq.s32.totalorder %s8, 1
    %p47 = scmp.ne.s32.totalorder %s42, %s44
    %p48 = scmp.eq.s32.totalorder %s8, 0
    %p49 = por %p47, %p48
    %p50 = scmp.ne.s32.totalorder %s42, %s44
    %p51 = scmp.eq.s32.totalorder %s13, 1
    %p52 = por %p50, %p51
    %p53 = scmp.ne.s32.totalorder %s44, %s45
    %p54 = scmp.eq.s32.totalorder %s13, 0
    %p55 = por %p53, %p54
    %p56 = scmp.ne.s32.totalorder %s44, %s45
    %p57 = scmp.eq.s32.totalorder %s14, 1
    %p58 = por %p56, %p57
    %p60 = scmp.ne.s32.totalorder %s45, %s59
    %p61 = scmp.eq.s32.totalorder %s14, 0
    %p62 = por %p60, %p61
    %s63 = ssub.s32 %s8, %s15
    %p64 = scmp.eq.s32.totalorder %s63, 0
    %s66 = sadd.s32 %s65, 1
    %s67 = scalar_select %p64, %s65, %s66
    %p70 = pneg %p64
    %p71 = scmp.eq.s32.totalorder %s8, 1
    %p72 = por %p70, %p71
    %p73 = scmp.ne.s32.totalorder %s65, %s68
    %p74 = scmp.eq.s32.totalorder %s8, 0
    %p75 = por %p73, %p74
    %p76 = scmp.ne.s32.totalorder %s65, %s68
    %p77 = scmp.eq.s32.totalorder %s13, 1
    %p78 = por %p76, %p77
    %p79 = scmp.ne.s32.totalorder %s68, %s69
    %p80 = scmp.eq.s32.totalorder %s13, 0
    %p81 = por %p79, %p80
    %p82 = scmp.ne.s32.totalorder %s68, %s69
    %p83 = scmp.eq.s32.totalorder %s14, 1
    %p84 = por %p82, %p83
    %p86 = scmp.ne.s32.totalorder %s69, %s85
    %p87 = scmp.eq.s32.totalorder %s14, 0
    %p88 = por %p86, %p87
    %p89 = scmp.le.s32.totalorder 1, %s8
    %p90 = scmp.lt.s32.totalorder %s8, 3
    %p91 = pnand %p89, %p90
    %p92 = pneg %p91
    // Predicated region
    $region9: #{to_gray_forward.1} parent=5 // pred_check
      _
    $region10: #{to_gray_forward.1} parent=5 // pred_check_branch
      %94 = sbr.rel (%p91) target = $region12
    $region11: #{to_gray_forward.1} parent=5 // pred_region
      %s95 = ssub.s32 %s8, 1
      // Predicated region
      $region13: #{to_gray_forward.1} parent=11 // pred_check
        %p96 = pneg %p55
      $region14: #{to_gray_forward.1} parent=11 // pred_check_branch
        %98 = sbr.rel (%p96) target = $region16
      $region15: #{to_gray_forward.1} parent=11 // pred_region
        _
      $region16: #{to_gray_forward.1} parent=11 // pred_fallthru
        _
    $region12: #{to_gray_forward.1} parent=5 // pred_fallthru
      _
    %p99 = scmp.lt.s32.totalorder %s8, 2
    // Predicated region
    $region17: #{to_gray_forward.1} parent=5 // pred_check
      %p100 = pneg %p99
    $region18: #{to_gray_forward.1} parent=5 // pred_check_branch
      %102 = sbr.rel (%p100) target = $region20
    $region19: #{to_gray_forward.1} parent=5 // pred_region
      // Predicated region
      $region21: #{to_gray_forward.1} parent=19 // pred_check
        %p103 = pneg %p28
      $region22: #{to_gray_forward.1} parent=19 // pred_check_branch
        %105 = sbr.rel (%p103) target = $region24
      $region23: #{to_gray_forward.1} parent=19 // pred_region
        %p106 = scmp.lt.s32.totalorder %s8, 1
        %s107 = scalar_select %p106, %s8, 1
        %s108 = smul.addr %s107, 54
        %s109 = smul.addr %s108, 4
        %s110 = scalar_lea.vmem %s0, %s109
      $region24: #{to_gray_forward.1} parent=19 // pred_fallthru
        _
    $region20: #{to_gray_forward.1} parent=5 // pred_fallthru
      _
    %p111 = scmp.le.s32.totalorder 1, %s8
    %p112 = scmp.lt.s32.totalorder %s8, 3
    %p113 = pnand %p111, %p112
    %p114 = pneg %p113
    // Predicated region
    $region25: #{to_gray_forward.1} parent=5 // pred_check
      _
    $region26: #{to_gray_forward.1} parent=5 // pred_check_branch
      %116 = sbr.rel (%p113) target = $region28
    $region27: #{to_gray_forward.1} parent=5 // pred_region
      %s117 = ssub.s32 %s8, 1
      %p118 = scmp.lt.s32.totalorder %s13, 1
      %s119 = scalar_select %p118, %s13, 1
      %s120 = smul.addr %s119, 54
      %s121 = smul.addr %s120, 4
      %s122 = scalar_lea.vmem %s0, %s121
      %p123 = pneg %p34
      %p124 = pneg %p31
      %p125 = pneg %p55
      %p126 = pneg %p52
      %p127 = pneg %p81
      %p128 = pneg %p78
      %p129 = scmp.lt.s32.totalorder %s13, 1
      %s130 = scalar_select %p129, %s13, 1
      %s131 = smul.addr %s130, 32
      %s132 = smul.addr %s131, 8
      %s133 = scalar_lea.vmem %s2, %s132
      %p134 = scmp.lt.s32.totalorder %s13, 1
      %s135 = scalar_select %p134, %s13, 1
      %s136 = smul.addr %s135, 54
      %s137 = smul.addr %s136, 4
      %s138 = scalar_lea.vmem %s0, %s137
      %p139 = scmp.lt.s32.totalorder %s13, 1
      %s140 = scalar_select %p139, %s13, 1
      %s141 = smul.addr %s140, 32
      %s142 = smul.addr %s141, 8
      %s143 = scalar_lea.vmem %s2, %s142
      %v144 = vld [vmem:[%s138] sm:$0xf]
      %v145 = vld [vmem:[%s138 + $0x4] sm:$0xf]
      %v146 = vld [vmem:[%s138 + $0xc] sm:$0xf]
      %v147 = vld [vmem:[%s138 + $0x10] sm:$0xf]
      %v148 = vld [vmem:[%s138 + $0x18] sm:$0xf]
      %v149 = vld [vmem:[%s138 + $0x1c] sm:$0xf]
      %v150 = vld [vmem:[%s138 + $0x24] sm:$0xf]
      %v151 = vld [vmem:[%s138 + $0x28] sm:$0xf]
      %v152 = vld [vmem:[%s138 + $0x30] sm:$0xf]
      %v153 = vld [vmem:[%s138 + $0x34] sm:$0xf]
      %v154 = vld [vmem:[%s138 + $0x3c] sm:$0xf]
      %v155 = vld [vmem:[%s138 + $0x40] sm:$0xf]
      %v156 = vld [vmem:[%s138 + $0x48] sm:$0xf]
      %v157 = vld [vmem:[%s138 + $0x4c] sm:$0xf]
      %v158 = vld [vmem:[%s138 + $0x54] sm:$0xf]
      %v159 = vld [vmem:[%s138 + $0x58] sm:$0xf]
      %v160 = vld [vmem:[%s138 + $0x60] sm:$0xf]
      %v161 = vld [vmem:[%s138 + $0x64] sm:$0xf]
      %v162 = vld [vmem:[%s138 + $0x6c] sm:$0xf]
      %v163 = vld [vmem:[%s138 + $0x70] sm:$0xf]
      %v164 = vld [vmem:[%s138 + $0x78] sm:$0xf]
      %v165 = vld [vmem:[%s138 + $0x7c] sm:$0xf]
      %v166 = vld [vmem:[%s138 + $0x84] sm:$0xf]
      %v167 = vld [vmem:[%s138 + $0x88] sm:$0xf]
      %v168 = vld [vmem:[%s138 + $0x90] sm:$0xf]
      %v169 = vld [vmem:[%s138 + $0x94] sm:$0xf]
      %v170 = vld [vmem:[%s138 + $0x9c] sm:$0xf]
      %v171 = vld [vmem:[%s138 + $0xa0] sm:$0xf]
      %v172 = vld [vmem:[%s138 + $0xa8] sm:$0xf]
      %v173 = vld [vmem:[%s138 + $0xac] sm:$0xf]
      %v174 = vld [vmem:[%s138 + $0xb4] sm:$0xf]
      %v175 = vld [vmem:[%s138 + $0xb8] sm:$0xf]
      %v176 = vunpack.c.l.bf16 %v144
      %v177 = vunpack.c.l.bf16 %v145
      %v178 = vunpack.c.l.bf16 %v146
      %v179 = vunpack.c.l.bf16 %v147
      %v180 = vunpack.c.l.bf16 %v148
      %v181 = vunpack.c.l.bf16 %v149
      %v182 = vunpack.c.l.bf16 %v150
      %v183 = vunpack.c.l.bf16 %v151
      %v184 = vunpack.c.l.bf16 %v152
      %v185 = vunpack.c.l.bf16 %v153
      %v186 = vunpack.c.l.bf16 %v154
      %v187 = vunpack.c.l.bf16 %v155
      %v188 = vunpack.c.l.bf16 %v156
      %v189 = vunpack.c.l.bf16 %v157
      %v190 = vunpack.c.l.bf16 %v158
      %v191 = vunpack.c.l.bf16 %v159
      %v192 = vunpack.c.l.bf16 %v160
      %v193 = vunpack.c.l.bf16 %v161
      %v194 = vunpack.c.l.bf16 %v162
      %v195 = vunpack.c.l.bf16 %v163
      %v196 = vunpack.c.l.bf16 %v164
      %v197 = vunpack.c.l.bf16 %v165
      %v198 = vunpack.c.l.bf16 %v166
      %v199 = vunpack.c.l.bf16 %v167
      %v200 = vunpack.c.l.bf16 %v168
      %v201 = vunpack.c.l.bf16 %v169
      %v202 = vunpack.c.l.bf16 %v170
      %v203 = vunpack.c.l.bf16 %v171
      %v204 = vunpack.c.l.bf16 %v172
      %v205 = vunpack.c.l.bf16 %v173
      %v206 = vunpack.c.l.bf16 %v174
      %v207 = vunpack.c.l.bf16 %v175
      %v208 = vld [vmem:[%s1] sm:$0x1]
      %v210 = vlaneseq
      %v211 = vshrl.u32 %v210, 7
      %v212 = vsub.s32 0, %v211
      %v213 = vrot.slane %v208, %v212
      %v215 = vmul.f32 %v176, %v213
      %v216 = vmul.f32 %v177, %v213
      %v217 = vmul.f32 %v178, %v213
      %v218 = vmul.f32 %v179, %v213
      %v219 = vmul.f32 %v180, %v213
      %v220 = vmul.f32 %v181, %v213
      %v221 = vmul.f32 %v182, %v213
      %v222 = vmul.f32 %v183, %v213
      %v223 = vmul.f32 %v184, %v213
      %v224 = vmul.f32 %v185, %v213
      %v225 = vmul.f32 %v186, %v213
      %v226 = vmul.f32 %v187, %v213
      %v227 = vmul.f32 %v188, %v213
      %v228 = vmul.f32 %v189, %v213
      %v229 = vmul.f32 %v190, %v213
      %v230 = vmul.f32 %v191, %v213
      %v231 = vmul.f32 %v192, %v213
      %v232 = vmul.f32 %v193, %v213
      %v233 = vmul.f32 %v194, %v213
      %v234 = vmul.f32 %v195, %v213
      %v235 = vmul.f32 %v196, %v213
      %v236 = vmul.f32 %v197, %v213
      %v237 = vmul.f32 %v198, %v213
      %v238 = vmul.f32 %v199, %v213
      %v239 = vmul.f32 %v200, %v213
      %v240 = vmul.f32 %v201, %v213
      %v241 = vmul.f32 %v202, %v213
      %v242 = vmul.f32 %v203, %v213
      %v243 = vmul.f32 %v204, %v213
      %v244 = vmul.f32 %v205, %v213
      %v245 = vmul.f32 %v206, %v213
      %v246 = vmul.f32 %v207, %v213
      %v247 = vadd.f32 %v215, 0.0
      %v248 = vadd.f32 %v216, 0.0
      %v249 = vadd.f32 %v217, 0.0
      %v250 = vadd.f32 %v218, 0.0
      %v251 = vadd.f32 %v219, 0.0
      %v252 = vadd.f32 %v220, 0.0
      %v253 = vadd.f32 %v221, 0.0
      %v254 = vadd.f32 %v222, 0.0
      %v255 = vadd.f32 %v223, 0.0
      %v256 = vadd.f32 %v224, 0.0
      %v257 = vadd.f32 %v225, 0.0
      %v258 = vadd.f32 %v226, 0.0
      %v259 = vadd.f32 %v227, 0.0
      %v260 = vadd.f32 %v228, 0.0
      %v261 = vadd.f32 %v229, 0.0
      %v262 = vadd.f32 %v230, 0.0
      %v263 = vadd.f32 %v231, 0.0
      %v264 = vadd.f32 %v232, 0.0
      %v265 = vadd.f32 %v233, 0.0
      %v266 = vadd.f32 %v234, 0.0
      %v267 = vadd.f32 %v235, 0.0
      %v268 = vadd.f32 %v236, 0.0
      %v269 = vadd.f32 %v237, 0.0
      %v270 = vadd.f32 %v238, 0.0
      %v271 = vadd.f32 %v239, 0.0
      %v272 = vadd.f32 %v240, 0.0
      %v273 = vadd.f32 %v241, 0.0
      %v274 = vadd.f32 %v242, 0.0
      %v275 = vadd.f32 %v243, 0.0
      %v276 = vadd.f32 %v244, 0.0
      %v277 = vadd.f32 %v245, 0.0
      %v278 = vadd.f32 %v246, 0.0
      %v279 = vld [vmem:[%s138 + $0x8] sm:$0x1]
      %v280 = vld [vmem:[%s138 + $0x14] sm:$0x1]
      %v281 = vld [vmem:[%s138 + $0x20] sm:$0x1]
      %v282 = vld [vmem:[%s138 + $0x2c] sm:$0x1]
      %v283 = vld [vmem:[%s138 + $0x38] sm:$0x1]
      %v284 = vld [vmem:[%s138 + $0x44] sm:$0x1]
      %v285 = vld [vmem:[%s138 + $0x50] sm:$0x1]
      %v286 = vld [vmem:[%s138 + $0x5c] sm:$0x1]
      %v287 = vld [vmem:[%s138 + $0x68] sm:$0x1]
      %v288 = vld [vmem:[%s138 + $0x74] sm:$0x1]
      %v289 = vld [vmem:[%s138 + $0x80] sm:$0x1]
      %v290 = vld [vmem:[%s138 + $0x8c] sm:$0x1]
      %v291 = vld [vmem:[%s138 + $0x98] sm:$0x1]
      %v292 = vld [vmem:[%s138 + $0xa4] sm:$0x1]
      %v293 = vld [vmem:[%s138 + $0xb0] sm:$0x1]
      %v294 = vld [vmem:[%s138 + $0xbc] sm:$0x1]
      %v295 = vunpack.c.l.bf16 %v279
      %v296 = vunpack.c.l.bf16 %v280
      %v297 = vunpack.c.l.bf16 %v281
      %v298 = vunpack.c.l.bf16 %v282
      %v299 = vunpack.c.l.bf16 %v283
      %v300 = vunpack.c.l.bf16 %v284
      %v301 = vunpack.c.l.bf16 %v285
      %v302 = vunpack.c.l.bf16 %v286
      %v303 = vunpack.c.l.bf16 %v287
      %v304 = vunpack.c.l.bf16 %v288
      %v305 = vunpack.c.l.bf16 %v289
      %v306 = vunpack.c.l.bf16 %v290
      %v307 = vunpack.c.l.bf16 %v291
      %v308 = vunpack.c.l.bf16 %v292
      %v309 = vunpack.c.l.bf16 %v293
      %v310 = vunpack.c.l.bf16 %v294
      %s311 = scalar_lea.vmem %s1, 1
      %v312 = vld [vmem:[%s311] sm:$0x1]
      %v314 = vlaneseq
      %v315 = vshrl.u32 %v314, 7
      %v316 = vsub.s32 0, %v315
      %v317 = vrot.slane %v312, %v316
      %v319 = vmul.f32 %v176, %v317
      %v320 = vmul.f32 %v177, %v317
      %v321 = vmul.f32 %v295, %v317
      %v322 = vmul.f32 %v178, %v317
      %v323 = vmul.f32 %v179, %v317
      %v324 = vmul.f32 %v296, %v317
      %v325 = vmul.f32 %v180, %v317
      %v326 = vmul.f32 %v181, %v317
      %v327 = vmul.f32 %v297, %v317
      %v328 = vmul.f32 %v182, %v317
      %v329 = vmul.f32 %v183, %v317
      %v330 = vmul.f32 %v298, %v317
      %v331 = vmul.f32 %v184, %v317
      %v332 = vmul.f32 %v185, %v317
      %v333 = vmul.f32 %v299, %v317
      %v334 = vmul.f32 %v186, %v317
      %v335 = vmul.f32 %v187, %v317
      %v336 = vmul.f32 %v300, %v317
      %v337 = vmul.f32 %v188, %v317
      %v338 = vmul.f32 %v189, %v317
      %v339 = vmul.f32 %v301, %v317
      %v340 = vmul.f32 %v190, %v317
      %v341 = vmul.f32 %v191, %v317
      %v342 = vmul.f32 %v302, %v317
      %v343 = vmul.f32 %v192, %v317
      %v344 = vmul.f32 %v193, %v317
      %v345 = vmul.f32 %v303, %v317
      %v346 = vmul.f32 %v194, %v317
      %v347 = vmul.f32 %v195, %v317
      %v348 = vmul.f32 %v304, %v317
      %v349 = vmul.f32 %v196, %v317
      %v350 = vmul.f32 %v197, %v317
      %v351 = vmul.f32 %v305, %v317
      %v352 = vmul.f32 %v198, %v317
      %v353 = vmul.f32 %v199, %v317
      %v354 = vmul.f32 %v306, %v317
      %v355 = vmul.f32 %v200, %v317
      %v356 = vmul.f32 %v201, %v317
      %v357 = vmul.f32 %v307, %v317
      %v358 = vmul.f32 %v202, %v317
      %v359 = vmul.f32 %v203, %v317
      %v360 = vmul.f32 %v308, %v317
      %v361 = vmul.f32 %v204, %v317
      %v362 = vmul.f32 %v205, %v317
      %v363 = vmul.f32 %v309, %v317
      %v364 = vmul.f32 %v206, %v317
      %v365 = vmul.f32 %v207, %v317
      %v366 = vmul.f32 %v310, %v317
      %vm415 = vcmask 1046528
      %v416 = vrot.slane %v319, 1
      %v417 = vrot.slane %v320, 1
      %v418 = vsel %vm415, %v416, %v417
      %v419 = vrot.slane %v321, 1
      %v420 = vsel %vm415, %v417, %v419
      %v421 = vrot.slane %v322, 1
      %v422 = vrot.slane %v323, 1
      %v423 = vsel %vm415, %v421, %v422
      %v424 = vrot.slane %v324, 1
      %v425 = vsel %vm415, %v422, %v424
      %v426 = vrot.slane %v325, 1
      %v427 = vrot.slane %v326, 1
      %v428 = vsel %vm415, %v426, %v427
      %v429 = vrot.slane %v327, 1
      %v430 = vsel %vm415, %v427, %v429
      %v431 = vrot.slane %v328, 1
      %v432 = vrot.slane %v329, 1
      %v433 = vsel %vm415, %v431, %v432
      %v434 = vrot.slane %v330, 1
      %v435 = vsel %vm415, %v432, %v434
      %v436 = vrot.slane %v331, 1
      %v437 = vrot.slane %v332, 1
      %v438 = vsel %vm415, %v436, %v437
      %v439 = vrot.slane %v333, 1
      %v440 = vsel %vm415, %v437, %v439
      %v441 = vrot.slane %v334, 1
      %v442 = vrot.slane %v335, 1
      %v443 = vsel %vm415, %v441, %v442
      %v444 = vrot.slane %v336, 1
      %v445 = vsel %vm415, %v442, %v444
      %v446 = vrot.slane %v337, 1
      %v447 = vrot.slane %v338, 1
      %v448 = vsel %vm415, %v446, %v447
      %v449 = vrot.slane %v339, 1
      %v450 = vsel %vm415, %v447, %v449
      %v451 = vrot.slane %v340, 1
      %v452 = vrot.slane %v341, 1
      %v453 = vsel %vm415, %v451, %v452
      %v454 = vrot.slane %v342, 1
      %v455 = vsel %vm415, %v452, %v454
      %v456 = vrot.slane %v343, 1
      %v457 = vrot.slane %v344, 1
      %v458 = vsel %vm415, %v456, %v457
      %v459 = vrot.slane %v345, 1
      %v460 = vsel %vm415, %v457, %v459
      %v461 = vrot.slane %v346, 1
      %v462 = vrot.slane %v347, 1
      %v463 = vsel %vm415, %v461, %v462
      %v464 = vrot.slane %v348, 1
      %v465 = vsel %vm415, %v462, %v464
      %v466 = vrot.slane %v349, 1
      %v467 = vrot.slane %v350, 1
      %v468 = vsel %vm415, %v466, %v467
      %v469 = vrot.slane %v351, 1
      %v470 = vsel %vm415, %v467, %v469
      %v471 = vrot.slane %v352, 1
      %v472 = vrot.slane %v353, 1
      %v473 = vsel %vm415, %v471, %v472
      %v474 = vrot.slane %v354, 1
      %v475 = vsel %vm415, %v472, %v474
      %v476 = vrot.slane %v355, 1
      %v477 = vrot.slane %v356, 1
      %v478 = vsel %vm415, %v476, %v477
      %v479 = vrot.slane %v357, 1
      %v480 = vsel %vm415, %v477, %v479
      %v481 = vrot.slane %v358, 1
      %v482 = vrot.slane %v359, 1
      %v483 = vsel %vm415, %v481, %v482
      %v484 = vrot.slane %v360, 1
      %v485 = vsel %vm415, %v482, %v484
      %v486 = vrot.slane %v361, 1
      %v487 = vrot.slane %v362, 1
      %v488 = vsel %vm415, %v486, %v487
      %v489 = vrot.slane %v363, 1
      %v490 = vsel %vm415, %v487, %v489
      %v491 = vrot.slane %v364, 1
      %v492 = vrot.slane %v365, 1
      %v493 = vsel %vm415, %v491, %v492
      %v494 = vrot.slane %v366, 1
      %v495 = vsel %vm415, %v492, %v494
      %v528 = vadd.f32 %v247, %v418
      %v529 = vadd.f32 %v248, %v420
      %v530 = vadd.f32 %v249, %v423
      %v531 = vadd.f32 %v250, %v425
      %v532 = vadd.f32 %v251, %v428
      %v533 = vadd.f32 %v252, %v430
      %v534 = vadd.f32 %v253, %v433
      %v535 = vadd.f32 %v254, %v435
      %v536 = vadd.f32 %v255, %v438
      %v537 = vadd.f32 %v256, %v440
      %v538 = vadd.f32 %v257, %v443
      %v539 = vadd.f32 %v258, %v445
      %v540 = vadd.f32 %v259, %v448
      %v541 = vadd.f32 %v260, %v450
      %v542 = vadd.f32 %v261, %v453
      %v543 = vadd.f32 %v262, %v455
      %v544 = vadd.f32 %v263, %v458
      %v545 = vadd.f32 %v264, %v460
      %v546 = vadd.f32 %v265, %v463
      %v547 = vadd.f32 %v266, %v465
      %v548 = vadd.f32 %v267, %v468
      %v549 = vadd.f32 %v268, %v470
      %v550 = vadd.f32 %v269, %v473
      %v551 = vadd.f32 %v270, %v475
      %v552 = vadd.f32 %v271, %v478
      %v553 = vadd.f32 %v272, %v480
      %v554 = vadd.f32 %v273, %v483
      %v555 = vadd.f32 %v274, %v485
      %v556 = vadd.f32 %v275, %v488
      %v557 = vadd.f32 %v276, %v490
      %v558 = vadd.f32 %v277, %v493
      %v559 = vadd.f32 %v278, %v495
      %v560 = vld [vmem:[%s138] sm:$0xe]
      %v561 = vld [vmem:[%s138 + $0xc] sm:$0xe]
      %v562 = vld [vmem:[%s138 + $0x18] sm:$0xe]
      %v563 = vld [vmem:[%s138 + $0x24] sm:$0xe]
      %v564 = vld [vmem:[%s138 + $0x30] sm:$0xe]
      %v565 = vld [vmem:[%s138 + $0x3c] sm:$0xe]
      %v566 = vld [vmem:[%s138 + $0x48] sm:$0xe]
      %v567 = vld [vmem:[%s138 + $0x54] sm:$0xe]
      %v568 = vld [vmem:[%s138 + $0x60] sm:$0xe]
      %v569 = vld [vmem:[%s138 + $0x6c] sm:$0xe]
      %v570 = vld [vmem:[%s138 + $0x78] sm:$0xe]
      %v571 = vld [vmem:[%s138 + $0x84] sm:$0xe]
      %v572 = vld [vmem:[%s138 + $0x90] sm:$0xe]
      %v573 = vld [vmem:[%s138 + $0x9c] sm:$0xe]
      %v574 = vld [vmem:[%s138 + $0xa8] sm:$0xe]
      %v575 = vld [vmem:[%s138 + $0xb4] sm:$0xe]
      %v576 = vunpack.c.l.bf16 %v560
      %v577 = vunpack.c.l.bf16 %v561
      %v578 = vunpack.c.l.bf16 %v562
      %v579 = vunpack.c.l.bf16 %v563
      %v580 = vunpack.c.l.bf16 %v564
      %v581 = vunpack.c.l.bf16 %v565
      %v582 = vunpack.c.l.bf16 %v566
      %v583 = vunpack.c.l.bf16 %v567
      %v584 = vunpack.c.l.bf16 %v568
      %v585 = vunpack.c.l.bf16 %v569
      %v586 = vunpack.c.l.bf16 %v570
      %v587 = vunpack.c.l.bf16 %v571
      %v588 = vunpack.c.l.bf16 %v572
      %v589 = vunpack.c.l.bf16 %v573
      %v590 = vunpack.c.l.bf16 %v574
      %v591 = vunpack.c.l.bf16 %v575
      %s592 = scalar_lea.vmem %s1, 2
      %v593 = vld [vmem:[%s592] sm:$0x1]
      %v595 = vlaneseq
      %v596 = vshrl.u32 %v595, 7
      %v597 = vsub.s32 0, %v596
      %v598 = vrot.slane %v593, %v597
      %v600 = vmul.f32 %v576, %v598
      %v601 = vmul.f32 %v177, %v598
      %v602 = vmul.f32 %v295, %v598
      %v603 = vmul.f32 %v577, %v598
      %v604 = vmul.f32 %v179, %v598
      %v605 = vmul.f32 %v296, %v598
      %v606 = vmul.f32 %v578, %v598
      %v607 = vmul.f32 %v181, %v598
      %v608 = vmul.f32 %v297, %v598
      %v609 = vmul.f32 %v579, %v598
      %v610 = vmul.f32 %v183, %v598
      %v611 = vmul.f32 %v298, %v598
      %v612 = vmul.f32 %v580, %v598
      %v613 = vmul.f32 %v185, %v598
      %v614 = vmul.f32 %v299, %v598
      %v615 = vmul.f32 %v581, %v598
      %v616 = vmul.f32 %v187, %v598
      %v617 = vmul.f32 %v300, %v598
      %v618 = vmul.f32 %v582, %v598
      %v619 = vmul.f32 %v189, %v598
      %v620 = vmul.f32 %v301, %v598
      %v621 = vmul.f32 %v583, %v598
      %v622 = vmul.f32 %v191, %v598
      %v623 = vmul.f32 %v302, %v598
      %v624 = vmul.f32 %v584, %v598
      %v625 = vmul.f32 %v193, %v598
      %v626 = vmul.f32 %v303, %v598
      %v627 = vmul.f32 %v585, %v598
      %v628 = vmul.f32 %v195, %v598
      %v629 = vmul.f32 %v304, %v598
      %v630 = vmul.f32 %v586, %v598
      %v631 = vmul.f32 %v197, %v598
      %v632 = vmul.f32 %v305, %v598
      %v633 = vmul.f32 %v587, %v598
      %v634 = vmul.f32 %v199, %v598
      %v635 = vmul.f32 %v306, %v598
      %v636 = vmul.f32 %v588, %v598
      %v637 = vmul.f32 %v201, %v598
      %v638 = vmul.f32 %v307, %v598
      %v639 = vmul.f32 %v589, %v598
      %v640 = vmul.f32 %v203, %v598
      %v641 = vmul.f32 %v308, %v598
      %v642 = vmul.f32 %v590, %v598
      %v643 = vmul.f32 %v205, %v598
      %v644 = vmul.f32 %v309, %v598
      %v645 = vmul.f32 %v591, %v598
      %v646 = vmul.f32 %v207, %v598
      %v647 = vmul.f32 %v310, %v598
      %vm696 = vcmask 1045504
      %v697 = vrot.slane %v600, 2
      %v698 = vrot.slane %v601, 2
      %v699 = vsel %vm696, %v697, %v698
      %v700 = vrot.slane %v602, 2
      %v701 = vsel %vm696, %v698, %v700
      %v702 = vrot.slane %v603, 2
      %v703 = vrot.slane %v604, 2
      %v704 = vsel %vm696, %v702, %v703
      %v705 = vrot.slane %v605, 2
      %v706 = vsel %vm696, %v703, %v705
      %v707 = vrot.slane %v606, 2
      %v708 = vrot.slane %v607, 2
      %v709 = vsel %vm696, %v707, %v708
      %v710 = vrot.slane %v608, 2
      %v711 = vsel %vm696, %v708, %v710
      %v712 = vrot.slane %v609, 2
      %v713 = vrot.slane %v610, 2
      %v714 = vsel %vm696, %v712, %v713
      %v715 = vrot.slane %v611, 2
      %v716 = vsel %vm696, %v713, %v715
      %v717 = vrot.slane %v612, 2
      %v718 = vrot.slane %v613, 2
      %v719 = vsel %vm696, %v717, %v718
      %v720 = vrot.slane %v614, 2
      %v721 = vsel %vm696, %v718, %v720
      %v722 = vrot.slane %v615, 2
      %v723 = vrot.slane %v616, 2
      %v724 = vsel %vm696, %v722, %v723
      %v725 = vrot.slane %v617, 2
      %v726 = vsel %vm696, %v723, %v725
      %v727 = vrot.slane %v618, 2
      %v728 = vrot.slane %v619, 2
      %v729 = vsel %vm696, %v727, %v728
      %v730 = vrot.slane %v620, 2
      %v731 = vsel %vm696, %v728, %v730
      %v732 = vrot.slane %v621, 2
      %v733 = vrot.slane %v622, 2
      %v734 = vsel %vm696, %v732, %v733
      %v735 = vrot.slane %v623, 2
      %v736 = vsel %vm696, %v733, %v735
      %v737 = vrot.slane %v624, 2
      %v738 = vrot.slane %v625, 2
      %v739 = vsel %vm696, %v737, %v738
      %v740 = vrot.slane %v626, 2
      %v741 = vsel %vm696, %v738, %v740
      %v742 = vrot.slane %v627, 2
      %v743 = vrot.slane %v628, 2
      %v744 = vsel %vm696, %v742, %v743
      %v745 = vrot.slane %v629, 2
      %v746 = vsel %vm696, %v743, %v745
      %v747 = vrot.slane %v630, 2
      %v748 = vrot.slane %v631, 2
      %v749 = vsel %vm696, %v747, %v748
      %v750 = vrot.slane %v632, 2
      %v751 = vsel %vm696, %v748, %v750
      %v752 = vrot.slane %v633, 2
      %v753 = vrot.slane %v634, 2
      %v754 = vsel %vm696, %v752, %v753
      %v755 = vrot.slane %v635, 2
      %v756 = vsel %vm696, %v753, %v755
      %v757 = vrot.slane %v636, 2
      %v758 = vrot.slane %v637, 2
      %v759 = vsel %vm696, %v757, %v758
      %v760 = vrot.slane %v638, 2
      %v761 = vsel %vm696, %v758, %v760
      %v762 = vrot.slane %v639, 2
      %v763 = vrot.slane %v640, 2
      %v764 = vsel %vm696, %v762, %v763
      %v765 = vrot.slane %v641, 2
      %v766 = vsel %vm696, %v763, %v765
      %v767 = vrot.slane %v642, 2
      %v768 = vrot.slane %v643, 2
      %v769 = vsel %vm696, %v767, %v768
      %v770 = vrot.slane %v644, 2
      %v771 = vsel %vm696, %v768, %v770
      %v772 = vrot.slane %v645, 2
      %v773 = vrot.slane %v646, 2
      %v774 = vsel %vm696, %v772, %v773
      %v775 = vrot.slane %v647, 2
      %v776 = vsel %vm696, %v773, %v775
      %v809 = vadd.f32 %v528, %v699
      %v810 = vadd.f32 %v529, %v701
      %v811 = vadd.f32 %v530, %v704
      %v812 = vadd.f32 %v531, %v706
      %v813 = vadd.f32 %v532, %v709
      %v814 = vadd.f32 %v533, %v711
      %v815 = vadd.f32 %v534, %v714
      %v816 = vadd.f32 %v535, %v716
      %v817 = vadd.f32 %v536, %v719
      %v818 = vadd.f32 %v537, %v721
      %v819 = vadd.f32 %v538, %v724
      %v820 = vadd.f32 %v539, %v726
      %v821 = vadd.f32 %v540, %v729
      %v822 = vadd.f32 %v541, %v731
      %v823 = vadd.f32 %v542, %v734
      %v824 = vadd.f32 %v543, %v736
      %v825 = vadd.f32 %v544, %v739
      %v826 = vadd.f32 %v545, %v741
      %v827 = vadd.f32 %v546, %v744
      %v828 = vadd.f32 %v547, %v746
      %v829 = vadd.f32 %v548, %v749
      %v830 = vadd.f32 %v549, %v751
      %v831 = vadd.f32 %v550, %v754
      %v832 = vadd.f32 %v551, %v756
      %v833 = vadd.f32 %v552, %v759
      %v834 = vadd.f32 %v553, %v761
      %v835 = vadd.f32 %v554, %v764
      %v836 = vadd.f32 %v555, %v766
      %v837 = vadd.f32 %v556, %v769
      %v838 = vadd.f32 %v557, %v771
      %v839 = vadd.f32 %v558, %v774
      %v840 = vadd.f32 %v559, %v776
      %s841 = scalar_lea.vmem %s138, 12
      %v842 = vld [vmem:[%s841] sm:$0xf]
      %v843 = vld [vmem:[%s841 + $0x4] sm:$0xf]
      %v844 = vld [vmem:[%s841 + $0xc] sm:$0xf]
      %v845 = vld [vmem:[%s841 + $0x10] sm:$0xf]
      %v846 = vld [vmem:[%s841 + $0x18] sm:$0xf]
      %v847 = vld [vmem:[%s841 + $0x1c] sm:$0xf]
      %v848 = vld [vmem:[%s841 + $0x24] sm:$0xf]
      %v849 = vld [vmem:[%s841 + $0x28] sm:$0xf]
      %v850 = vld [vmem:[%s841 + $0x30] sm:$0xf]
      %v851 = vld [vmem:[%s841 + $0x34] sm:$0xf]
      %v852 = vld [vmem:[%s841 + $0x3c] sm:$0xf]
      %v853 = vld [vmem:[%s841 + $0x40] sm:$0xf]
      %v854 = vld [vmem:[%s841 + $0x48] sm:$0xf]
      %v855 = vld [vmem:[%s841 + $0x4c] sm:$0xf]
      %v856 = vld [vmem:[%s841 + $0x54] sm:$0xf]
      %v857 = vld [vmem:[%s841 + $0x58] sm:$0xf]
      %v858 = vld [vmem:[%s841 + $0x60] sm:$0xf]
      %v859 = vld [vmem:[%s841 + $0x64] sm:$0xf]
      %v860 = vld [vmem:[%s841 + $0x6c] sm:$0xf]
      %v861 = vld [vmem:[%s841 + $0x70] sm:$0xf]
      %v862 = vld [vmem:[%s841 + $0x78] sm:$0xf]
      %v863 = vld [vmem:[%s841 + $0x7c] sm:$0xf]
      %v864 = vld [vmem:[%s841 + $0x84] sm:$0xf]
      %v865 = vld [vmem:[%s841 + $0x88] sm:$0xf]
      %v866 = vld [vmem:[%s841 + $0x90] sm:$0xf]
      %v867 = vld [vmem:[%s841 + $0x94] sm:$0xf]
      %v868 = vld [vmem:[%s841 + $0x9c] sm:$0xf]
      %v869 = vld [vmem:[%s841 + $0xa0] sm:$0xf]
      %v870 = vld [vmem:[%s841 + $0xa8] sm:$0xf]
      %v871 = vld [vmem:[%s841 + $0xac] sm:$0xf]
      %v872 = vld [vmem:[%s841 + $0xb4] sm:$0xf]
      %v873 = vld [vmem:[%s841 + $0xb8] sm:$0xf]
      %v874 = vunpack.c.l.bf16 %v842
      %v875 = vunpack.c.l.bf16 %v843
      %v876 = vunpack.c.l.bf16 %v844
      %v877 = vunpack.c.l.bf16 %v845
      %v878 = vunpack.c.l.bf16 %v846
      %v879 = vunpack.c.l.bf16 %v847
      %v880 = vunpack.c.l.bf16 %v848
      %v881 = vunpack.c.l.bf16 %v849
      %v882 = vunpack.c.l.bf16 %v850
      %v883 = vunpack.c.l.bf16 %v851
      %v884 = vunpack.c.l.bf16 %v852
      %v885 = vunpack.c.l.bf16 %v853
      %v886 = vunpack.c.l.bf16 %v854
      %v887 = vunpack.c.l.bf16 %v855
      %v888 = vunpack.c.l.bf16 %v856
      %v889 = vunpack.c.l.bf16 %v857
      %v890 = vunpack.c.l.bf16 %v858
      %v891 = vunpack.c.l.bf16 %v859
      %v892 = vunpack.c.l.bf16 %v860
      %v893 = vunpack.c.l.bf16 %v861
      %v894 = vunpack.c.l.bf16 %v862
      %v895 = vunpack.c.l.bf16 %v863
      %v896 = vunpack.c.l.bf16 %v864
      %v897 = vunpack.c.l.bf16 %v865
      %v898 = vunpack.c.l.bf16 %v866
      %v899 = vunpack.c.l.bf16 %v867
      %v900 = vunpack.c.l.bf16 %v868
      %v901 = vunpack.c.l.bf16 %v869
      %v902 = vunpack.c.l.bf16 %v870
      %v903 = vunpack.c.l.bf16 %v871
      %v904 = vunpack.c.l.bf16 %v872
      %v905 = vunpack.c.l.bf16 %v873
      %s906 = scalar_lea.vmem %s1, 3
      %v907 = vld [vmem:[%s906] sm:$0x1]
      %v909 = vlaneseq
      %v910 = vshrl.u32 %v909, 7
      %v911 = vsub.s32 0, %v910
      %v912 = vrot.slane %v907, %v911
      %v914 = vmul.f32 %v874, %v912
      %v915 = vmul.f32 %v875, %v912
      %v916 = vmul.f32 %v876, %v912
      %v917 = vmul.f32 %v877, %v912
      %v918 = vmul.f32 %v878, %v912
      %v919 = vmul.f32 %v879, %v912
      %v920 = vmul.f32 %v880, %v912
      %v921 = vmul.f32 %v881, %v912
      %v922 = vmul.f32 %v882, %v912
      %v923 = vmul.f32 %v883, %v912
      %v924 = vmul.f32 %v884, %v912
      %v925 = vmul.f32 %v885, %v912
      %v926 = vmul.f32 %v886, %v912
      %v927 = vmul.f32 %v887, %v912
      %v928 = vmul.f32 %v888, %v912
      %v929 = vmul.f32 %v889, %v912
      %v930 = vmul.f32 %v890, %v912
      %v931 = vmul.f32 %v891, %v912
      %v932 = vmul.f32 %v892, %v912
      %v933 = vmul.f32 %v893, %v912
      %v934 = vmul.f32 %v894, %v912
      %v935 = vmul.f32 %v895, %v912
      %v936 = vmul.f32 %v896, %v912
      %v937 = vmul.f32 %v897, %v912
      %v938 = vmul.f32 %v898, %v912
      %v939 = vmul.f32 %v899, %v912
      %v940 = vmul.f32 %v900, %v912
      %v941 = vmul.f32 %v901, %v912
      %v942 = vmul.f32 %v902, %v912
      %v943 = vmul.f32 %v903, %v912
      %v944 = vmul.f32 %v904, %v912
      %v945 = vmul.f32 %v905, %v912
      %v946 = vadd.f32 %v809, %v914
      %v947 = vadd.f32 %v810, %v915
      %v948 = vadd.f32 %v811, %v916
      %v949 = vadd.f32 %v812, %v917
      %v950 = vadd.f32 %v813, %v918
      %v951 = vadd.f32 %v814, %v919
      %v952 = vadd.f32 %v815, %v920
      %v953 = vadd.f32 %v816, %v921
      %v954 = vadd.f32 %v817, %v922
      %v955 = vadd.f32 %v818, %v923
      %v956 = vadd.f32 %v819, %v924
      %v957 = vadd.f32 %v820, %v925
      %v958 = vadd.f32 %v821, %v926
      %v959 = vadd.f32 %v822, %v927
      %v960 = vadd.f32 %v823, %v928
      %v961 = vadd.f32 %v824, %v929
      %v962 = vadd.f32 %v825, %v930
      %v963 = vadd.f32 %v826, %v931
      %v964 = vadd.f32 %v827, %v932
      %v965 = vadd.f32 %v828, %v933
      %v966 = vadd.f32 %v829, %v934
      %v967 = vadd.f32 %v830, %v935
      %v968 = vadd.f32 %v831, %v936
      %v969 = vadd.f32 %v832, %v937
      %v970 = vadd.f32 %v833, %v938
      %v971 = vadd.f32 %v834, %v939
      %v972 = vadd.f32 %v835, %v940
      %v973 = vadd.f32 %v836, %v941
      %v974 = vadd.f32 %v837, %v942
      %v975 = vadd.f32 %v838, %v943
      %v976 = vadd.f32 %v839, %v944
      %v977 = vadd.f32 %v840, %v945
      %v978 = vld [vmem:[%s841 + $0x8] sm:$0x1]
      %v979 = vld [vmem:[%s841 + $0x14] sm:$0x1]
      %v980 = vld [vmem:[%s841 + $0x20] sm:$0x1]
      %v981 = vld [vmem:[%s841 + $0x2c] sm:$0x1]
      %v982 = vld [vmem:[%s841 + $0x38] sm:$0x1]
      %v983 = vld [vmem:[%s841 + $0x44] sm:$0x1]
      %v984 = vld [vmem:[%s841 + $0x50] sm:$0x1]
      %v985 = vld [vmem:[%s841 + $0x5c] sm:$0x1]
      %v986 = vld [vmem:[%s841 + $0x68] sm:$0x1]
      %v987 = vld [vmem:[%s841 + $0x74] sm:$0x1]
      %v988 = vld [vmem:[%s841 + $0x80] sm:$0x1]
      %v989 = vld [vmem:[%s841 + $0x8c] sm:$0x1]
      %v990 = vld [vmem:[%s841 + $0x98] sm:$0x1]
      %v991 = vld [vmem:[%s841 + $0xa4] sm:$0x1]
      %v992 = vld [vmem:[%s841 + $0xb0] sm:$0x1]
      %v993 = vld [vmem:[%s841 + $0xbc] sm:$0x1]
      %v994 = vunpack.c.l.bf16 %v978
      %v995 = vunpack.c.l.bf16 %v979
      %v996 = vunpack.c.l.bf16 %v980
      %v997 = vunpack.c.l.bf16 %v981
      %v998 = vunpack.c.l.bf16 %v982
      %v999 = vunpack.c.l.bf16 %v983
      %v1000 = vunpack.c.l.bf16 %v984
      %v1001 = vunpack.c.l.bf16 %v985
      %v1002 = vunpack.c.l.bf16 %v986
      %v1003 = vunpack.c.l.bf16 %v987
      %v1004 = vunpack.c.l.bf16 %v988
      %v1005 = vunpack.c.l.bf16 %v989
      %v1006 = vunpack.c.l.bf16 %v990
      %v1007 = vunpack.c.l.bf16 %v991
      %v1008 = vunpack.c.l.bf16 %v992
      %v1009 = vunpack.c.l.bf16 %v993
      %s1010 = scalar_lea.vmem %s1, 4
      %v1011 = vld [vmem:[%s1010] sm:$0x1]
      %v1013 = vlaneseq
      %v1014 = vshrl.u32 %v1013, 7
      %v1015 = vsub.s32 0, %v1014
      %v1016 = vrot.slane %v1011, %v1015
      %v1018 = vmul.f32 %v874, %v1016
      %v1019 = vmul.f32 %v875, %v1016
      %v1020 = vmul.f32 %v994, %v1016
      %v1021 = vmul.f32 %v876, %v1016
      %v1022 = vmul.f32 %v877, %v1016
      %v1023 = vmul.f32 %v995, %v1016
      %v1024 = vmul.f32 %v878, %v1016
      %v1025 = vmul.f32 %v879, %v1016
      %v1026 = vmul.f32 %v996, %v1016
      %v1027 = vmul.f32 %v880, %v1016
      %v1028 = vmul.f32 %v881, %v1016
      %v1029 = vmul.f32 %v997, %v1016
      %v1030 = vmul.f32 %v882, %v1016
      %v1031 = vmul.f32 %v883, %v1016
      %v1032 = vmul.f32 %v998, %v1016
      %v1033 = vmul.f32 %v884, %v1016
      %v1034 = vmul.f32 %v885, %v1016
      %v1035 = vmul.f32 %v999, %v1016
      %v1036 = vmul.f32 %v886, %v1016
      %v1037 = vmul.f32 %v887, %v1016
      %v1038 = vmul.f32 %v1000, %v1016
      %v1039 = vmul.f32 %v888, %v1016
      %v1040 = vmul.f32 %v889, %v1016
      %v1041 = vmul.f32 %v1001, %v1016
      %v1042 = vmul.f32 %v890, %v1016
      %v1043 = vmul.f32 %v891, %v1016
      %v1044 = vmul.f32 %v1002, %v1016
      %v1045 = vmul.f32 %v892, %v1016
      %v1046 = vmul.f32 %v893, %v1016
      %v1047 = vmul.f32 %v1003, %v1016
      %v1048 = vmul.f32 %v894, %v1016
      %v1049 = vmul.f32 %v895, %v1016
      %v1050 = vmul.f32 %v1004, %v1016
      %v1051 = vmul.f32 %v896, %v1016
      %v1052 = vmul.f32 %v897, %v1016
      %v1053 = vmul.f32 %v1005, %v1016
      %v1054 = vmul.f32 %v898, %v1016
      %v1055 = vmul.f32 %v899, %v1016
      %v1056 = vmul.f32 %v1006, %v1016
      %v1057 = vmul.f32 %v900, %v1016
      %v1058 = vmul.f32 %v901, %v1016
      %v1059 = vmul.f32 %v1007, %v1016
      %v1060 = vmul.f32 %v902, %v1016
      %v1061 = vmul.f32 %v903, %v1016
      %v1062 = vmul.f32 %v1008, %v1016
      %v1063 = vmul.f32 %v904, %v1016
      %v1064 = vmul.f32 %v905, %v1016
      %v1065 = vmul.f32 %v1009, %v1016
      %v1114 = vrot.slane %v1018, 1
      %v1115 = vrot.slane %v1019, 1
      %v1116 = vsel %vm415, %v1114, %v1115
      %v1117 = vrot.slane %v1020, 1
      %v1118 = vsel %vm415, %v1115, %v1117
      %v1119 = vrot.slane %v1021, 1
      %v1120 = vrot.slane %v1022, 1
      %v1121 = vsel %vm415, %v1119, %v1120
      %v1122 = vrot.slane %v1023, 1
      %v1123 = vsel %vm415, %v1120, %v1122
      %v1124 = vrot.slane %v1024, 1
      %v1125 = vrot.slane %v1025, 1
      %v1126 = vsel %vm415, %v1124, %v1125
      %v1127 = vrot.slane %v1026, 1
      %v1128 = vsel %vm415, %v1125, %v1127
      %v1129 = vrot.slane %v1027, 1
      %v1130 = vrot.slane %v1028, 1
      %v1131 = vsel %vm415, %v1129, %v1130
      %v1132 = vrot.slane %v1029, 1
      %v1133 = vsel %vm415, %v1130, %v1132
      %v1134 = vrot.slane %v1030, 1
      %v1135 = vrot.slane %v1031, 1
      %v1136 = vsel %vm415, %v1134, %v1135
      %v1137 = vrot.slane %v1032, 1
      %v1138 = vsel %vm415, %v1135, %v1137
      %v1139 = vrot.slane %v1033, 1
      %v1140 = vrot.slane %v1034, 1
      %v1141 = vsel %vm415, %v1139, %v1140
      %v1142 = vrot.slane %v1035, 1
      %v1143 = vsel %vm415, %v1140, %v1142
      %v1144 = vrot.slane %v1036, 1
      %v1145 = vrot.slane %v1037, 1
      %v1146 = vsel %vm415, %v1144, %v1145
      %v1147 = vrot.slane %v1038, 1
      %v1148 = vsel %vm415, %v1145, %v1147
      %v1149 = vrot.slane %v1039, 1
      %v1150 = vrot.slane %v1040, 1
      %v1151 = vsel %vm415, %v1149, %v1150
      %v1152 = vrot.slane %v1041, 1
      %v1153 = vsel %vm415, %v1150, %v1152
      %v1154 = vrot.slane %v1042, 1
      %v1155 = vrot.slane %v1043, 1
      %v1156 = vsel %vm415, %v1154, %v1155
      %v1157 = vrot.slane %v1044, 1
      %v1158 = vsel %vm415, %v1155, %v1157
      %v1159 = vrot.slane %v1045, 1
      %v1160 = vrot.slane %v1046, 1
      %v1161 = vsel %vm415, %v1159, %v1160
      %v1162 = vrot.slane %v1047, 1
      %v1163 = vsel %vm415, %v1160, %v1162
      %v1164 = vrot.slane %v1048, 1
      %v1165 = vrot.slane %v1049, 1
      %v1166 = vsel %vm415, %v1164, %v1165
      %v1167 = vrot.slane %v1050, 1
      %v1168 = vsel %vm415, %v1165, %v1167
      %v1169 = vrot.slane %v1051, 1
      %v1170 = vrot.slane %v1052, 1
      %v1171 = vsel %vm415, %v1169, %v1170
      %v1172 = vrot.slane %v1053, 1
      %v1173 = vsel %vm415, %v1170, %v1172
      %v1174 = vrot.slane %v1054, 1
      %v1175 = vrot.slane %v1055, 1
      %v1176 = vsel %vm415, %v1174, %v1175
      %v1177 = vrot.slane %v1056, 1
      %v1178 = vsel %vm415, %v1175, %v1177
      %v1179 = vrot.slane %v1057, 1
      %v1180 = vrot.slane %v1058, 1
      %v1181 = vsel %vm415, %v1179, %v1180
      %v1182 = vrot.slane %v1059, 1
      %v1183 = vsel %vm415, %v1180, %v1182
      %v1184 = vrot.slane %v1060, 1
      %v1185 = vrot.slane %v1061, 1
      %v1186 = vsel %vm415, %v1184, %v1185
      %v1187 = vrot.slane %v1062, 1
      %v1188 = vsel %vm415, %v1185, %v1187
      %v1189 = vrot.slane %v1063, 1
      %v1190 = vrot.slane %v1064, 1
      %v1191 = vsel %vm415, %v1189, %v1190
      %v1192 = vrot.slane %v1065, 1
      %v1193 = vsel %vm415, %v1190, %v1192
      %v1226 = vadd.f32 %v946, %v1116
      %v1227 = vadd.f32 %v947, %v1118
      %v1228 = vadd.f32 %v948, %v1121
      %v1229 = vadd.f32 %v949, %v1123
      %v1230 = vadd.f32 %v950, %v1126
      %v1231 = vadd.f32 %v951, %v1128
      %v1232 = vadd.f32 %v952, %v1131
      %v1233 = vadd.f32 %v953, %v1133
      %v1234 = vadd.f32 %v954, %v1136
      %v1235 = vadd.f32 %v955, %v1138
      %v1236 = vadd.f32 %v956, %v1141
      %v1237 = vadd.f32 %v957, %v1143
      %v1238 = vadd.f32 %v958, %v1146
      %v1239 = vadd.f32 %v959, %v1148
      %v1240 = vadd.f32 %v960, %v1151
      %v1241 = vadd.f32 %v961, %v1153
      %v1242 = vadd.f32 %v962, %v1156
      %v1243 = vadd.f32 %v963, %v1158
      %v1244 = vadd.f32 %v964, %v1161
      %v1245 = vadd.f32 %v965, %v1163
      %v1246 = vadd.f32 %v966, %v1166
      %v1247 = vadd.f32 %v967, %v1168
      %v1248 = vadd.f32 %v968, %v1171
      %v1249 = vadd.f32 %v969, %v1173
      %v1250 = vadd.f32 %v970, %v1176
      %v1251 = vadd.f32 %v971, %v1178
      %v1252 = vadd.f32 %v972, %v1181
      %v1253 = vadd.f32 %v973, %v1183
      %v1254 = vadd.f32 %v974, %v1186
      %v1255 = vadd.f32 %v975, %v1188
      %v1256 = vadd.f32 %v976, %v1191
      %v1257 = vadd.f32 %v977, %v1193
      %v1258 = vld [vmem:[%s841] sm:$0xe]
      %v1259 = vld [vmem:[%s841 + $0xc] sm:$0xe]
      %v1260 = vld [vmem:[%s841 + $0x18] sm:$0xe]
      %v1261 = vld [vmem:[%s841 + $0x24] sm:$0xe]
      %v1262 = vld [vmem:[%s841 + $0x30] sm:$0xe]
      %v1263 = vld [vmem:[%s841 + $0x3c] sm:$0xe]
      %v1264 = vld [vmem:[%s841 + $0x48] sm:$0xe]
      %v1265 = vld [vmem:[%s841 + $0x54] sm:$0xe]
      %v1266 = vld [vmem:[%s841 + $0x60] sm:$0xe]
      %v1267 = vld [vmem:[%s841 + $0x6c] sm:$0xe]
      %v1268 = vld [vmem:[%s841 + $0x78] sm:$0xe]
      %v1269 = vld [vmem:[%s841 + $0x84] sm:$0xe]
      %v1270 = vld [vmem:[%s841 + $0x90] sm:$0xe]
      %v1271 = vld [vmem:[%s841 + $0x9c] sm:$0xe]
      %v1272 = vld [vmem:[%s841 + $0xa8] sm:$0xe]
      %v1273 = vld [vmem:[%s841 + $0xb4] sm:$0xe]
      %v1274 = vunpack.c.l.bf16 %v1258
      %v1275 = vunpack.c.l.bf16 %v1259
      %v1276 = vunpack.c.l.bf16 %v1260
      %v1277 = vunpack.c.l.bf16 %v1261
      %v1278 = vunpack.c.l.bf16 %v1262
      %v1279 = vunpack.c.l.bf16 %v1263
      %v1280 = vunpack.c.l.bf16 %v1264
      %v1281 = vunpack.c.l.bf16 %v1265
      %v1282 = vunpack.c.l.bf16 %v1266
      %v1283 = vunpack.c.l.bf16 %v1267
      %v1284 = vunpack.c.l.bf16 %v1268
      %v1285 = vunpack.c.l.bf16 %v1269
      %v1286 = vunpack.c.l.bf16 %v1270
      %v1287 = vunpack.c.l.bf16 %v1271
      %v1288 = vunpack.c.l.bf16 %v1272
      %v1289 = vunpack.c.l.bf16 %v1273
      %s1290 = scalar_lea.vmem %s1, 5
      %v1291 = vld [vmem:[%s1290] sm:$0x1]
      %v1293 = vlaneseq
      %v1294 = vshrl.u32 %v1293, 7
      %v1295 = vsub.s32 0, %v1294
      %v1296 = vrot.slane %v1291, %v1295
      %v1298 = vmul.f32 %v1274, %v1296
      %v1299 = vmul.f32 %v875, %v1296
      %v1300 = vmul.f32 %v994, %v1296
      %v1301 = vmul.f32 %v1275, %v1296
      %v1302 = vmul.f32 %v877, %v1296
      %v1303 = vmul.f32 %v995, %v1296
      %v1304 = vmul.f32 %v1276, %v1296
      %v1305 = vmul.f32 %v879, %v1296
      %v1306 = vmul.f32 %v996, %v1296
      %v1307 = vmul.f32 %v1277, %v1296
      %v1308 = vmul.f32 %v881, %v1296
      %v1309 = vmul.f32 %v997, %v1296
      %v1310 = vmul.f32 %v1278, %v1296
      %v1311 = vmul.f32 %v883, %v1296
      %v1312 = vmul.f32 %v998, %v1296
      %v1313 = vmul.f32 %v1279, %v1296
      %v1314 = vmul.f32 %v885, %v1296
      %v1315 = vmul.f32 %v999, %v1296
      %v1316 = vmul.f32 %v1280, %v1296
      %v1317 = vmul.f32 %v887, %v1296
      %v1318 = vmul.f32 %v1000, %v1296
      %v1319 = vmul.f32 %v1281, %v1296
      %v1320 = vmul.f32 %v889, %v1296
      %v1321 = vmul.f32 %v1001, %v1296
      %v1322 = vmul.f32 %v1282, %v1296
      %v1323 = vmul.f32 %v891, %v1296
      %v1324 = vmul.f32 %v1002, %v1296
      %v1325 = vmul.f32 %v1283, %v1296
      %v1326 = vmul.f32 %v893, %v1296
      %v1327 = vmul.f32 %v1003, %v1296
      %v1328 = vmul.f32 %v1284, %v1296
      %v1329 = vmul.f32 %v895, %v1296
      %v1330 = vmul.f32 %v1004, %v1296
      %v1331 = vmul.f32 %v1285, %v1296
      %v1332 = vmul.f32 %v897, %v1296
      %v1333 = vmul.f32 %v1005, %v1296
      %v1334 = vmul.f32 %v1286, %v1296
      %v1335 = vmul.f32 %v899, %v1296
      %v1336 = vmul.f32 %v1006, %v1296
      %v1337 = vmul.f32 %v1287, %v1296
      %v1338 = vmul.f32 %v901, %v1296
      %v1339 = vmul.f32 %v1007, %v1296
      %v1340 = vmul.f32 %v1288, %v1296
      %v1341 = vmul.f32 %v903, %v1296
      %v1342 = vmul.f32 %v1008, %v1296
      %v1343 = vmul.f32 %v1289, %v1296
      %v1344 = vmul.f32 %v905, %v1296
      %v1345 = vmul.f32 %v1009, %v1296
      %v1394 = vrot.slane %v1298, 2
      %v1395 = vrot.slane %v1299, 2
      %v1396 = vsel %vm696, %v1394, %v1395
      %v1397 = vrot.slane %v1300, 2
      %v1398 = vsel %vm696, %v1395, %v1397
      %v1399 = vrot.slane %v1301, 2
      %v1400 = vrot.slane %v1302, 2
      %v1401 = vsel %vm696, %v1399, %v1400
      %v1402 = vrot.slane %v1303, 2
      %v1403 = vsel %vm696, %v1400, %v1402
      %v1404 = vrot.slane %v1304, 2
      %v1405 = vrot.slane %v1305, 2
      %v1406 = vsel %vm696, %v1404, %v1405
      %v1407 = vrot.slane %v1306, 2
      %v1408 = vsel %vm696, %v1405, %v1407
      %v1409 = vrot.slane %v1307, 2
      %v1410 = vrot.slane %v1308, 2
      %v1411 = vsel %vm696, %v1409, %v1410
      %v1412 = vrot.slane %v1309, 2
      %v1413 = vsel %vm696, %v1410, %v1412
      %v1414 = vrot.slane %v1310, 2
      %v1415 = vrot.slane %v1311, 2
      %v1416 = vsel %vm696, %v1414, %v1415
      %v1417 = vrot.slane %v1312, 2
      %v1418 = vsel %vm696, %v1415, %v1417
      %v1419 = vrot.slane %v1313, 2
      %v1420 = vrot.slane %v1314, 2
      %v1421 = vsel %vm696, %v1419, %v1420
      %v1422 = vrot.slane %v1315, 2
      %v1423 = vsel %vm696, %v1420, %v1422
      %v1424 = vrot.slane %v1316, 2
      %v1425 = vrot.slane %v1317, 2
      %v1426 = vsel %vm696, %v1424, %v1425
      %v1427 = vrot.slane %v1318, 2
      %v1428 = vsel %vm696, %v1425, %v1427
      %v1429 = vrot.slane %v1319, 2
      %v1430 = vrot.slane %v1320, 2
      %v1431 = vsel %vm696, %v1429, %v1430
      %v1432 = vrot.slane %v1321, 2
      %v1433 = vsel %vm696, %v1430, %v1432
      %v1434 = vrot.slane %v1322, 2
      %v1435 = vrot.slane %v1323, 2
      %v1436 = vsel %vm696, %v1434, %v1435
      %v1437 = vrot.slane %v1324, 2
      %v1438 = vsel %vm696, %v1435, %v1437
      %v1439 = vrot.slane %v1325, 2
      %v1440 = vrot.slane %v1326, 2
      %v1441 = vsel %vm696, %v1439, %v1440
      %v1442 = vrot.slane %v1327, 2
      %v1443 = vsel %vm696, %v1440, %v1442
      %v1444 = vrot.slane %v1328, 2
      %v1445 = vrot.slane %v1329, 2
      %v1446 = vsel %vm696, %v1444, %v1445
      %v1447 = vrot.slane %v1330, 2
      %v1448 = vsel %vm696, %v1445, %v1447
      %v1449 = vrot.slane %v1331, 2
      %v1450 = vrot.slane %v1332, 2
      %v1451 = vsel %vm696, %v1449, %v1450
      %v1452 = vrot.slane %v1333, 2
      %v1453 = vsel %vm696, %v1450, %v1452
      %v1454 = vrot.slane %v1334, 2
      %v1455 = vrot.slane %v1335, 2
      %v1456 = vsel %vm696, %v1454, %v1455
      %v1457 = vrot.slane %v1336, 2
      %v1458 = vsel %vm696, %v1455, %v1457
      %v1459 = vrot.slane %v1337, 2
      %v1460 = vrot.slane %v1338, 2
      %v1461 = vsel %vm696, %v1459, %v1460
      %v1462 = vrot.slane %v1339, 2
      %v1463 = vsel %vm696, %v1460, %v1462
      %v1464 = vrot.slane %v1340, 2
      %v1465 = vrot.slane %v1341, 2
      %v1466 = vsel %vm696, %v1464, %v1465
      %v1467 = vrot.slane %v1342, 2
      %v1468 = vsel %vm696, %v1465, %v1467
      %v1469 = vrot.slane %v1343, 2
      %v1470 = vrot.slane %v1344, 2
      %v1471 = vsel %vm696, %v1469, %v1470
      %v1472 = vrot.slane %v1345, 2
      %v1473 = vsel %vm696, %v1470, %v1472
      %v1506 = vadd.f32 %v1226, %v1396
      %v1507 = vadd.f32 %v1227, %v1398
      %v1508 = vadd.f32 %v1228, %v1401
      %v1509 = vadd.f32 %v1229, %v1403
      %v1510 = vadd.f32 %v1230, %v1406
      %v1511 = vadd.f32 %v1231, %v1408
      %v1512 = vadd.f32 %v1232, %v1411
      %v1513 = vadd.f32 %v1233, %v1413
      %v1514 = vadd.f32 %v1234, %v1416
      %v1515 = vadd.f32 %v1235, %v1418
      %v1516 = vadd.f32 %v1236, %v1421
      %v1517 = vadd.f32 %v1237, %v1423
      %v1518 = vadd.f32 %v1238, %v1426
      %v1519 = vadd.f32 %v1239, %v1428
      %v1520 = vadd.f32 %v1240, %v1431
      %v1521 = vadd.f32 %v1241, %v1433
      %v1522 = vadd.f32 %v1242, %v1436
      %v1523 = vadd.f32 %v1243, %v1438
      %v1524 = vadd.f32 %v1244, %v1441
      %v1525 = vadd.f32 %v1245, %v1443
      %v1526 = vadd.f32 %v1246, %v1446
      %v1527 = vadd.f32 %v1247, %v1448
      %v1528 = vadd.f32 %v1248, %v1451
      %v1529 = vadd.f32 %v1249, %v1453
      %v1530 = vadd.f32 %v1250, %v1456
      %v1531 = vadd.f32 %v1251, %v1458
      %v1532 = vadd.f32 %v1252, %v1461
      %v1533 = vadd.f32 %v1253, %v1463
      %v1534 = vadd.f32 %v1254, %v1466
      %v1535 = vadd.f32 %v1255, %v1468
      %v1536 = vadd.f32 %v1256, %v1471
      %v1537 = vadd.f32 %v1257, %v1473
      %s1538 = scalar_lea.vmem %s138, 24
      %v1539 = vld [vmem:[%s1538] sm:$0xf]
      %v1540 = vld [vmem:[%s1538 + $0x4] sm:$0xf]
      %v1541 = vld [vmem:[%s1538 + $0xc] sm:$0xf]
      %v1542 = vld [vmem:[%s1538 + $0x10] sm:$0xf]
      %v1543 = vld [vmem:[%s1538 + $0x18] sm:$0xf]
      %v1544 = vld [vmem:[%s1538 + $0x1c] sm:$0xf]
      %v1545 = vld [vmem:[%s1538 + $0x24] sm:$0xf]
      %v1546 = vld [vmem:[%s1538 + $0x28] sm:$0xf]
      %v1547 = vld [vmem:[%s1538 + $0x30] sm:$0xf]
      %v1548 = vld [vmem:[%s1538 + $0x34] sm:$0xf]
      %v1549 = vld [vmem:[%s1538 + $0x3c] sm:$0xf]
      %v1550 = vld [vmem:[%s1538 + $0x40] sm:$0xf]
      %v1551 = vld [vmem:[%s1538 + $0x48] sm:$0xf]
      %v1552 = vld [vmem:[%s1538 + $0x4c] sm:$0xf]
      %v1553 = vld [vmem:[%s1538 + $0x54] sm:$0xf]
      %v1554 = vld [vmem:[%s1538 + $0x58] sm:$0xf]
      %v1555 = vld [vmem:[%s1538 + $0x60] sm:$0xf]
      %v1556 = vld [vmem:[%s1538 + $0x64] sm:$0xf]
      %v1557 = vld [vmem:[%s1538 + $0x6c] sm:$0xf]
      %v1558 = vld [vmem:[%s1538 + $0x70] sm:$0xf]
      %v1559 = vld [vmem:[%s1538 + $0x78] sm:$0xf]
      %v1560 = vld [vmem:[%s1538 + $0x7c] sm:$0xf]
      %v1561 = vld [vmem:[%s1538 + $0x84] sm:$0xf]
      %v1562 = vld [vmem:[%s1538 + $0x88] sm:$0xf]
      %v1563 = vld [vmem:[%s1538 + $0x90] sm:$0xf]
      %v1564 = vld [vmem:[%s1538 + $0x94] sm:$0xf]
      %v1565 = vld [vmem:[%s1538 + $0x9c] sm:$0xf]
      %v1566 = vld [vmem:[%s1538 + $0xa0] sm:$0xf]
      %v1567 = vld [vmem:[%s1538 + $0xa8] sm:$0xf]
      %v1568 = vld [vmem:[%s1538 + $0xac] sm:$0xf]
      %v1569 = vld [vmem:[%s1538 + $0xb4] sm:$0xf]
      %v1570 = vld [vmem:[%s1538 + $0xb8] sm:$0xf]
      %v1571 = vunpack.c.l.bf16 %v1539
      %v1572 = vunpack.c.l.bf16 %v1540
      %v1573 = vunpack.c.l.bf16 %v1541
      %v1574 = vunpack.c.l.bf16 %v1542
      %v1575 = vunpack.c.l.bf16 %v1543
      %v1576 = vunpack.c.l.bf16 %v1544
      %v1577 = vunpack.c.l.bf16 %v1545
      %v1578 = vunpack.c.l.bf16 %v1546
      %v1579 = vunpack.c.l.bf16 %v1547
      %v1580 = vunpack.c.l.bf16 %v1548
      %v1581 = vunpack.c.l.bf16 %v1549
      %v1582 = vunpack.c.l.bf16 %v1550
      %v1583 = vunpack.c.l.bf16 %v1551
      %v1584 = vunpack.c.l.bf16 %v1552
      %v1585 = vunpack.c.l.bf16 %v1553
      %v1586 = vunpack.c.l.bf16 %v1554
      %v1587 = vunpack.c.l.bf16 %v1555
      %v1588 = vunpack.c.l.bf16 %v1556
      %v1589 = vunpack.c.l.bf16 %v1557
      %v1590 = vunpack.c.l.bf16 %v1558
      %v1591 = vunpack.c.l.bf16 %v1559
      %v1592 = vunpack.c.l.bf16 %v1560
      %v1593 = vunpack.c.l.bf16 %v1561
      %v1594 = vunpack.c.l.bf16 %v1562
      %v1595 = vunpack.c.l.bf16 %v1563
      %v1596 = vunpack.c.l.bf16 %v1564
      %v1597 = vunpack.c.l.bf16 %v1565
      %v1598 = vunpack.c.l.bf16 %v1566
      %v1599 = vunpack.c.l.bf16 %v1567
      %v1600 = vunpack.c.l.bf16 %v1568
      %v1601 = vunpack.c.l.bf16 %v1569
      %v1602 = vunpack.c.l.bf16 %v1570
      %s1603 = scalar_lea.vmem %s1, 6
      %v1604 = vld [vmem:[%s1603] sm:$0x1]
      %v1606 = vlaneseq
      %v1607 = vshrl.u32 %v1606, 7
      %v1608 = vsub.s32 0, %v1607
      %v1609 = vrot.slane %v1604, %v1608
      %v1611 = vmul.f32 %v1571, %v1609
      %v1612 = vmul.f32 %v1572, %v1609
      %v1613 = vmul.f32 %v1573, %v1609
      %v1614 = vmul.f32 %v1574, %v1609
      %v1615 = vmul.f32 %v1575, %v1609
      %v1616 = vmul.f32 %v1576, %v1609
      %v1617 = vmul.f32 %v1577, %v1609
      %v1618 = vmul.f32 %v1578, %v1609
      %v1619 = vmul.f32 %v1579, %v1609
      %v1620 = vmul.f32 %v1580, %v1609
      %v1621 = vmul.f32 %v1581, %v1609
      %v1622 = vmul.f32 %v1582, %v1609
      %v1623 = vmul.f32 %v1583, %v1609
      %v1624 = vmul.f32 %v1584, %v1609
      %v1625 = vmul.f32 %v1585, %v1609
      %v1626 = vmul.f32 %v1586, %v1609
      %v1627 = vmul.f32 %v1587, %v1609
      %v1628 = vmul.f32 %v1588, %v1609
      %v1629 = vmul.f32 %v1589, %v1609
      %v1630 = vmul.f32 %v1590, %v1609
      %v1631 = vmul.f32 %v1591, %v1609
      %v1632 = vmul.f32 %v1592, %v1609
      %v1633 = vmul.f32 %v1593, %v1609
      %v1634 = vmul.f32 %v1594, %v1609
      %v1635 = vmul.f32 %v1595, %v1609
      %v1636 = vmul.f32 %v1596, %v1609
      %v1637 = vmul.f32 %v1597, %v1609
      %v1638 = vmul.f32 %v1598, %v1609
      %v1639 = vmul.f32 %v1599, %v1609
      %v1640 = vmul.f32 %v1600, %v1609
      %v1641 = vmul.f32 %v1601, %v1609
      %v1642 = vmul.f32 %v1602, %v1609
      %v1643 = vadd.f32 %v1506, %v1611
      %v1644 = vadd.f32 %v1507, %v1612
      %v1645 = vadd.f32 %v1508, %v1613
      %v1646 = vadd.f32 %v1509, %v1614
      %v1647 = vadd.f32 %v1510, %v1615
      %v1648 = vadd.f32 %v1511, %v1616
      %v1649 = vadd.f32 %v1512, %v1617
      %v1650 = vadd.f32 %v1513, %v1618
      %v1651 = vadd.f32 %v1514, %v1619
      %v1652 = vadd.f32 %v1515, %v1620
      %v1653 = vadd.f32 %v1516, %v1621
      %v1654 = vadd.f32 %v1517, %v1622
      %v1655 = vadd.f32 %v1518, %v1623
      %v1656 = vadd.f32 %v1519, %v1624
      %v1657 = vadd.f32 %v1520, %v1625
      %v1658 = vadd.f32 %v1521, %v1626
      %v1659 = vadd.f32 %v1522, %v1627
      %v1660 = vadd.f32 %v1523, %v1628
      %v1661 = vadd.f32 %v1524, %v1629
      %v1662 = vadd.f32 %v1525, %v1630
      %v1663 = vadd.f32 %v1526, %v1631
      %v1664 = vadd.f32 %v1527, %v1632
      %v1665 = vadd.f32 %v1528, %v1633
      %v1666 = vadd.f32 %v1529, %v1634
      %v1667 = vadd.f32 %v1530, %v1635
      %v1668 = vadd.f32 %v1531, %v1636
      %v1669 = vadd.f32 %v1532, %v1637
      %v1670 = vadd.f32 %v1533, %v1638
      %v1671 = vadd.f32 %v1534, %v1639
      %v1672 = vadd.f32 %v1535, %v1640
      %v1673 = vadd.f32 %v1536, %v1641
      %v1674 = vadd.f32 %v1537, %v1642
      %v1675 = vld [vmem:[%s1538 + $0x8] sm:$0x1]
      %v1676 = vld [vmem:[%s1538 + $0x14] sm:$0x1]
      %v1677 = vld [vmem:[%s1538 + $0x20] sm:$0x1]
      %v1678 = vld [vmem:[%s1538 + $0x2c] sm:$0x1]
      %v1679 = vld [vmem:[%s1538 + $0x38] sm:$0x1]
      %v1680 = vld [vmem:[%s1538 + $0x44] sm:$0x1]
      %v1681 = vld [vmem:[%s1538 + $0x50] sm:$0x1]
      %v1682 = vld [vmem:[%s1538 + $0x5c] sm:$0x1]
      %v1683 = vld [vmem:[%s1538 + $0x68] sm:$0x1]
      %v1684 = vld [vmem:[%s1538 + $0x74] sm:$0x1]
      %v1685 = vld [vmem:[%s1538 + $0x80] sm:$0x1]
      %v1686 = vld [vmem:[%s1538 + $0x8c] sm:$0x1]
      %v1687 = vld [vmem:[%s1538 + $0x98] sm:$0x1]
      %v1688 = vld [vmem:[%s1538 + $0xa4] sm:$0x1]
      %v1689 = vld [vmem:[%s1538 + $0xb0] sm:$0x1]
      %v1690 = vld [vmem:[%s1538 + $0xbc] sm:$0x1]
      %v1691 = vunpack.c.l.bf16 %v1675
      %v1692 = vunpack.c.l.bf16 %v1676
      %v1693 = vunpack.c.l.bf16 %v1677
      %v1694 = vunpack.c.l.bf16 %v1678
      %v1695 = vunpack.c.l.bf16 %v1679
      %v1696 = vunpack.c.l.bf16 %v1680
      %v1697 = vunpack.c.l.bf16 %v1681
      %v1698 = vunpack.c.l.bf16 %v1682
      %v1699 = vunpack.c.l.bf16 %v1683
      %v1700 = vunpack.c.l.bf16 %v1684
      %v1701 = vunpack.c.l.bf16 %v1685
      %v1702 = vunpack.c.l.bf16 %v1686
      %v1703 = vunpack.c.l.bf16 %v1687
      %v1704 = vunpack.c.l.bf16 %v1688
      %v1705 = vunpack.c.l.bf16 %v1689
      %v1706 = vunpack.c.l.bf16 %v1690
      %s1707 = scalar_lea.vmem %s1, 7
      %v1708 = vld [vmem:[%s1707] sm:$0x1]
      %v1710 = vlaneseq
      %v1711 = vshrl.u32 %v1710, 7
      %v1712 = vsub.s32 0, %v1711
      %v1713 = vrot.slane %v1708, %v1712
      %v1715 = vmul.f32 %v1571, %v1713
      %v1716 = vmul.f32 %v1572, %v1713
      %v1717 = vmul.f32 %v1691, %v1713
      %v1718 = vmul.f32 %v1573, %v1713
      %v1719 = vmul.f32 %v1574, %v1713
      %v1720 = vmul.f32 %v1692, %v1713
      %v1721 = vmul.f32 %v1575, %v1713
      %v1722 = vmul.f32 %v1576, %v1713
      %v1723 = vmul.f32 %v1693, %v1713
      %v1724 = vmul.f32 %v1577, %v1713
      %v1725 = vmul.f32 %v1578, %v1713
      %v1726 = vmul.f32 %v1694, %v1713
      %v1727 = vmul.f32 %v1579, %v1713
      %v1728 = vmul.f32 %v1580, %v1713
      %v1729 = vmul.f32 %v1695, %v1713
      %v1730 = vmul.f32 %v1581, %v1713
      %v1731 = vmul.f32 %v1582, %v1713
      %v1732 = vmul.f32 %v1696, %v1713
      %v1733 = vmul.f32 %v1583, %v1713
      %v1734 = vmul.f32 %v1584, %v1713
      %v1735 = vmul.f32 %v1697, %v1713
      %v1736 = vmul.f32 %v1585, %v1713
      %v1737 = vmul.f32 %v1586, %v1713
      %v1738 = vmul.f32 %v1698, %v1713
      %v1739 = vmul.f32 %v1587, %v1713
      %v1740 = vmul.f32 %v1588, %v1713
      %v1741 = vmul.f32 %v1699, %v1713
      %v1742 = vmul.f32 %v1589, %v1713
      %v1743 = vmul.f32 %v1590, %v1713
      %v1744 = vmul.f32 %v1700, %v1713
      %v1745 = vmul.f32 %v1591, %v1713
      %v1746 = vmul.f32 %v1592, %v1713
      %v1747 = vmul.f32 %v1701, %v1713
      %v1748 = vmul.f32 %v1593, %v1713
      %v1749 = vmul.f32 %v1594, %v1713
      %v1750 = vmul.f32 %v1702, %v1713
      %v1751 = vmul.f32 %v1595, %v1713
      %v1752 = vmul.f32 %v1596, %v1713
      %v1753 = vmul.f32 %v1703, %v1713
      %v1754 = vmul.f32 %v1597, %v1713
      %v1755 = vmul.f32 %v1598, %v1713
      %v1756 = vmul.f32 %v1704, %v1713
      %v1757 = vmul.f32 %v1599, %v1713
      %v1758 = vmul.f32 %v1600, %v1713
      %v1759 = vmul.f32 %v1705, %v1713
      %v1760 = vmul.f32 %v1601, %v1713
      %v1761 = vmul.f32 %v1602, %v1713
      %v1762 = vmul.f32 %v1706, %v1713
      %v1811 = vrot.slane %v1715, 1
      %v1812 = vrot.slane %v1716, 1
      %v1813 = vsel %vm415, %v1811, %v1812
      %v1814 = vrot.slane %v1717, 1
      %v1815 = vsel %vm415, %v1812, %v1814
      %v1816 = vrot.slane %v1718, 1
      %v1817 = vrot.slane %v1719, 1
      %v1818 = vsel %vm415, %v1816, %v1817
      %v1819 = vrot.slane %v1720, 1
      %v1820 = vsel %vm415, %v1817, %v1819
      %v1821 = vrot.slane %v1721, 1
      %v1822 = vrot.slane %v1722, 1
      %v1823 = vsel %vm415, %v1821, %v1822
      %v1824 = vrot.slane %v1723, 1
      %v1825 = vsel %vm415, %v1822, %v1824
      %v1826 = vrot.slane %v1724, 1
      %v1827 = vrot.slane %v1725, 1
      %v1828 = vsel %vm415, %v1826, %v1827
      %v1829 = vrot.slane %v1726, 1
      %v1830 = vsel %vm415, %v1827, %v1829
      %v1831 = vrot.slane %v1727, 1
      %v1832 = vrot.slane %v1728, 1
      %v1833 = vsel %vm415, %v1831, %v1832
      %v1834 = vrot.slane %v1729, 1
      %v1835 = vsel %vm415, %v1832, %v1834
      %v1836 = vrot.slane %v1730, 1
      %v1837 = vrot.slane %v1731, 1
      %v1838 = vsel %vm415, %v1836, %v1837
      %v1839 = vrot.slane %v1732, 1
      %v1840 = vsel %vm415, %v1837, %v1839
      %v1841 = vrot.slane %v1733, 1
      %v1842 = vrot.slane %v1734, 1
      %v1843 = vsel %vm415, %v1841, %v1842
      %v1844 = vrot.slane %v1735, 1
      %v1845 = vsel %vm415, %v1842, %v1844
      %v1846 = vrot.slane %v1736, 1
      %v1847 = vrot.slane %v1737, 1
      %v1848 = vsel %vm415, %v1846, %v1847
      %v1849 = vrot.slane %v1738, 1
      %v1850 = vsel %vm415, %v1847, %v1849
      %v1851 = vrot.slane %v1739, 1
      %v1852 = vrot.slane %v1740, 1
      %v1853 = vsel %vm415, %v1851, %v1852
      %v1854 = vrot.slane %v1741, 1
      %v1855 = vsel %vm415, %v1852, %v1854
      %v1856 = vrot.slane %v1742, 1
      %v1857 = vrot.slane %v1743, 1
      %v1858 = vsel %vm415, %v1856, %v1857
      %v1859 = vrot.slane %v1744, 1
      %v1860 = vsel %vm415, %v1857, %v1859
      %v1861 = vrot.slane %v1745, 1
      %v1862 = vrot.slane %v1746, 1
      %v1863 = vsel %vm415, %v1861, %v1862
      %v1864 = vrot.slane %v1747, 1
      %v1865 = vsel %vm415, %v1862, %v1864
      %v1866 = vrot.slane %v1748, 1
      %v1867 = vrot.slane %v1749, 1
      %v1868 = vsel %vm415, %v1866, %v1867
      %v1869 = vrot.slane %v1750, 1
      %v1870 = vsel %vm415, %v1867, %v1869
      %v1871 = vrot.slane %v1751, 1
      %v1872 = vrot.slane %v1752, 1
      %v1873 = vsel %vm415, %v1871, %v1872
      %v1874 = vrot.slane %v1753, 1
      %v1875 = vsel %vm415, %v1872, %v1874
      %v1876 = vrot.slane %v1754, 1
      %v1877 = vrot.slane %v1755, 1
      %v1878 = vsel %vm415, %v1876, %v1877
      %v1879 = vrot.slane %v1756, 1
      %v1880 = vsel %vm415, %v1877, %v1879
      %v1881 = vrot.slane %v1757, 1
      %v1882 = vrot.slane %v1758, 1
      %v1883 = vsel %vm415, %v1881, %v1882
      %v1884 = vrot.slane %v1759, 1
      %v1885 = vsel %vm415, %v1882, %v1884
      %v1886 = vrot.slane %v1760, 1
      %v1887 = vrot.slane %v1761, 1
      %v1888 = vsel %vm415, %v1886, %v1887
      %v1889 = vrot.slane %v1762, 1
      %v1890 = vsel %vm415, %v1887, %v1889
      %v1923 = vadd.f32 %v1643, %v1813
      %v1924 = vadd.f32 %v1644, %v1815
      %v1925 = vadd.f32 %v1645, %v1818
      %v1926 = vadd.f32 %v1646, %v1820
      %v1927 = vadd.f32 %v1647, %v1823
      %v1928 = vadd.f32 %v1648, %v1825
      %v1929 = vadd.f32 %v1649, %v1828
      %v1930 = vadd.f32 %v1650, %v1830
      %v1931 = vadd.f32 %v1651, %v1833
      %v1932 = vadd.f32 %v1652, %v1835
      %v1933 = vadd.f32 %v1653, %v1838
      %v1934 = vadd.f32 %v1654, %v1840
      %v1935 = vadd.f32 %v1655, %v1843
      %v1936 = vadd.f32 %v1656, %v1845
      %v1937 = vadd.f32 %v1657, %v1848
      %v1938 = vadd.f32 %v1658, %v1850
      %v1939 = vadd.f32 %v1659, %v1853
      %v1940 = vadd.f32 %v1660, %v1855
      %v1941 = vadd.f32 %v1661, %v1858
      %v1942 = vadd.f32 %v1662, %v1860
      %v1943 = vadd.f32 %v1663, %v1863
      %v1944 = vadd.f32 %v1664, %v1865
      %v1945 = vadd.f32 %v1665, %v1868
      %v1946 = vadd.f32 %v1666, %v1870
      %v1947 = vadd.f32 %v1667, %v1873
      %v1948 = vadd.f32 %v1668, %v1875
      %v1949 = vadd.f32 %v1669, %v1878
      %v1950 = vadd.f32 %v1670, %v1880
      %v1951 = vadd.f32 %v1671, %v1883
      %v1952 = vadd.f32 %v1672, %v1885
      %v1953 = vadd.f32 %v1673, %v1888
      %v1954 = vadd.f32 %v1674, %v1890
      %v1955 = vld [vmem:[%s1538] sm:$0xe]
      %v1956 = vld [vmem:[%s1538 + $0xc] sm:$0xe]
      %v1957 = vld [vmem:[%s1538 + $0x18] sm:$0xe]
      %v1958 = vld [vmem:[%s1538 + $0x24] sm:$0xe]
      %v1959 = vld [vmem:[%s1538 + $0x30] sm:$0xe]
      %v1960 = vld [vmem:[%s1538 + $0x3c] sm:$0xe]
      %v1961 = vld [vmem:[%s1538 + $0x48] sm:$0xe]
      %v1962 = vld [vmem:[%s1538 + $0x54] sm:$0xe]
      %v1963 = vld [vmem:[%s1538 + $0x60] sm:$0xe]
      %v1964 = vld [vmem:[%s1538 + $0x6c] sm:$0xe]
      %v1965 = vld [vmem:[%s1538 + $0x78] sm:$0xe]
      %v1966 = vld [vmem:[%s1538 + $0x84] sm:$0xe]
      %v1967 = vld [vmem:[%s1538 + $0x90] sm:$0xe]
      %v1968 = vld [vmem:[%s1538 + $0x9c] sm:$0xe]
      %v1969 = vld [vmem:[%s1538 + $0xa8] sm:$0xe]
      %v1970 = vld [vmem:[%s1538 + $0xb4] sm:$0xe]
      %v1971 = vunpack.c.l.bf16 %v1955
      %v1972 = vunpack.c.l.bf16 %v1956
      %v1973 = vunpack.c.l.bf16 %v1957
      %v1974 = vunpack.c.l.bf16 %v1958
      %v1975 = vunpack.c.l.bf16 %v1959
      %v1976 = vunpack.c.l.bf16 %v1960
      %v1977 = vunpack.c.l.bf16 %v1961
      %v1978 = vunpack.c.l.bf16 %v1962
      %v1979 = vunpack.c.l.bf16 %v1963
      %v1980 = vunpack.c.l.bf16 %v1964
      %v1981 = vunpack.c.l.bf16 %v1965
      %v1982 = vunpack.c.l.bf16 %v1966
      %v1983 = vunpack.c.l.bf16 %v1967
      %v1984 = vunpack.c.l.bf16 %v1968
      %v1985 = vunpack.c.l.bf16 %v1969
      %v1986 = vunpack.c.l.bf16 %v1970
      %s1987 = scalar_lea.vmem %s1, 8
      %v1988 = vld [vmem:[%s1987] sm:$0x1]
      %v1990 = vlaneseq
      %v1991 = vshrl.u32 %v1990, 7
      %v1992 = vsub.s32 0, %v1991
      %v1993 = vrot.slane %v1988, %v1992
      %v1995 = vmul.f32 %v1971, %v1993
      %v1996 = vmul.f32 %v1572, %v1993
      %v1997 = vmul.f32 %v1691, %v1993
      %v1998 = vmul.f32 %v1972, %v1993
      %v1999 = vmul.f32 %v1574, %v1993
      %v2000 = vmul.f32 %v1692, %v1993
      %v2001 = vmul.f32 %v1973, %v1993
      %v2002 = vmul.f32 %v1576, %v1993
      %v2003 = vmul.f32 %v1693, %v1993
      %v2004 = vmul.f32 %v1974, %v1993
      %v2005 = vmul.f32 %v1578, %v1993
      %v2006 = vmul.f32 %v1694, %v1993
      %v2007 = vmul.f32 %v1975, %v1993
      %v2008 = vmul.f32 %v1580, %v1993
      %v2009 = vmul.f32 %v1695, %v1993
      %v2010 = vmul.f32 %v1976, %v1993
      %v2011 = vmul.f32 %v1582, %v1993
      %v2012 = vmul.f32 %v1696, %v1993
      %v2013 = vmul.f32 %v1977, %v1993
      %v2014 = vmul.f32 %v1584, %v1993
      %v2015 = vmul.f32 %v1697, %v1993
      %v2016 = vmul.f32 %v1978, %v1993
      %v2017 = vmul.f32 %v1586, %v1993
      %v2018 = vmul.f32 %v1698, %v1993
      %v2019 = vmul.f32 %v1979, %v1993
      %v2020 = vmul.f32 %v1588, %v1993
      %v2021 = vmul.f32 %v1699, %v1993
      %v2022 = vmul.f32 %v1980, %v1993
      %v2023 = vmul.f32 %v1590, %v1993
      %v2024 = vmul.f32 %v1700, %v1993
      %v2025 = vmul.f32 %v1981, %v1993
      %v2026 = vmul.f32 %v1592, %v1993
      %v2027 = vmul.f32 %v1701, %v1993
      %v2028 = vmul.f32 %v1982, %v1993
      %v2029 = vmul.f32 %v1594, %v1993
      %v2030 = vmul.f32 %v1702, %v1993
      %v2031 = vmul.f32 %v1983, %v1993
      %v2032 = vmul.f32 %v1596, %v1993
      %v2033 = vmul.f32 %v1703, %v1993
      %v2034 = vmul.f32 %v1984, %v1993
      %v2035 = vmul.f32 %v1598, %v1993
      %v2036 = vmul.f32 %v1704, %v1993
      %v2037 = vmul.f32 %v1985, %v1993
      %v2038 = vmul.f32 %v1600, %v1993
      %v2039 = vmul.f32 %v1705, %v1993
      %v2040 = vmul.f32 %v1986, %v1993
      %v2041 = vmul.f32 %v1602, %v1993
      %v2042 = vmul.f32 %v1706, %v1993
      %v2091 = vrot.slane %v1995, 2
      %v2092 = vrot.slane %v1996, 2
      %v2093 = vsel %vm696, %v2091, %v2092
      %v2094 = vrot.slane %v1997, 2
      %v2095 = vsel %vm696, %v2092, %v2094
      %v2096 = vrot.slane %v1998, 2
      %v2097 = vrot.slane %v1999, 2
      %v2098 = vsel %vm696, %v2096, %v2097
      %v2099 = vrot.slane %v2000, 2
      %v2100 = vsel %vm696, %v2097, %v2099
      %v2101 = vrot.slane %v2001, 2
      %v2102 = vrot.slane %v2002, 2
      %v2103 = vsel %vm696, %v2101, %v2102
      %v2104 = vrot.slane %v2003, 2
      %v2105 = vsel %vm696, %v2102, %v2104
      %v2106 = vrot.slane %v2004, 2
      %v2107 = vrot.slane %v2005, 2
      %v2108 = vsel %vm696, %v2106, %v2107
      %v2109 = vrot.slane %v2006, 2
      %v2110 = vsel %vm696, %v2107, %v2109
      %v2111 = vrot.slane %v2007, 2
      %v2112 = vrot.slane %v2008, 2
      %v2113 = vsel %vm696, %v2111, %v2112
      %v2114 = vrot.slane %v2009, 2
      %v2115 = vsel %vm696, %v2112, %v2114
      %v2116 = vrot.slane %v2010, 2
      %v2117 = vrot.slane %v2011, 2
      %v2118 = vsel %vm696, %v2116, %v2117
      %v2119 = vrot.slane %v2012, 2
      %v2120 = vsel %vm696, %v2117, %v2119
      %v2121 = vrot.slane %v2013, 2
      %v2122 = vrot.slane %v2014, 2
      %v2123 = vsel %vm696, %v2121, %v2122
      %v2124 = vrot.slane %v2015, 2
      %v2125 = vsel %vm696, %v2122, %v2124
      %v2126 = vrot.slane %v2016, 2
      %v2127 = vrot.slane %v2017, 2
      %v2128 = vsel %vm696, %v2126, %v2127
      %v2129 = vrot.slane %v2018, 2
      %v2130 = vsel %vm696, %v2127, %v2129
      %v2131 = vrot.slane %v2019, 2
      %v2132 = vrot.slane %v2020, 2
      %v2133 = vsel %vm696, %v2131, %v2132
      %v2134 = vrot.slane %v2021, 2
      %v2135 = vsel %vm696, %v2132, %v2134
      %v2136 = vrot.slane %v2022, 2
      %v2137 = vrot.slane %v2023, 2
      %v2138 = vsel %vm696, %v2136, %v2137
      %v2139 = vrot.slane %v2024, 2
      %v2140 = vsel %vm696, %v2137, %v2139
      %v2141 = vrot.slane %v2025, 2
      %v2142 = vrot.slane %v2026, 2
      %v2143 = vsel %vm696, %v2141, %v2142
      %v2144 = vrot.slane %v2027, 2
      %v2145 = vsel %vm696, %v2142, %v2144
      %v2146 = vrot.slane %v2028, 2
      %v2147 = vrot.slane %v2029, 2
      %v2148 = vsel %vm696, %v2146, %v2147
      %v2149 = vrot.slane %v2030, 2
      %v2150 = vsel %vm696, %v2147, %v2149
      %v2151 = vrot.slane %v2031, 2
      %v2152 = vrot.slane %v2032, 2
      %v2153 = vsel %vm696, %v2151, %v2152
      %v2154 = vrot.slane %v2033, 2
      %v2155 = vsel %vm696, %v2152, %v2154
      %v2156 = vrot.slane %v2034, 2
      %v2157 = vrot.slane %v2035, 2
      %v2158 = vsel %vm696, %v2156, %v2157
      %v2159 = vrot.slane %v2036, 2
      %v2160 = vsel %vm696, %v2157, %v2159
      %v2161 = vrot.slane %v2037, 2
      %v2162 = vrot.slane %v2038, 2
      %v2163 = vsel %vm696, %v2161, %v2162
      %v2164 = vrot.slane %v2039, 2
      %v2165 = vsel %vm696, %v2162, %v2164
      %v2166 = vrot.slane %v2040, 2
      %v2167 = vrot.slane %v2041, 2
      %v2168 = vsel %vm696, %v2166, %v2167
      %v2169 = vrot.slane %v2042, 2
      %v2170 = vsel %vm696, %v2167, %v2169
      %v2203 = vadd.f32 %v1923, %v2093
      %v2204 = vadd.f32 %v1924, %v2095
      %v2205 = vadd.f32 %v1925, %v2098
      %v2206 = vadd.f32 %v1926, %v2100
      %v2207 = vadd.f32 %v1927, %v2103
      %v2208 = vadd.f32 %v1928, %v2105
      %v2209 = vadd.f32 %v1929, %v2108
      %v2210 = vadd.f32 %v1930, %v2110
      %v2211 = vadd.f32 %v1931, %v2113
      %v2212 = vadd.f32 %v1932, %v2115
      %v2213 = vadd.f32 %v1933, %v2118
      %v2214 = vadd.f32 %v1934, %v2120
      %v2215 = vadd.f32 %v1935, %v2123
      %v2216 = vadd.f32 %v1936, %v2125
      %v2217 = vadd.f32 %v1937, %v2128
      %v2218 = vadd.f32 %v1938, %v2130
      %v2219 = vadd.f32 %v1939, %v2133
      %v2220 = vadd.f32 %v1940, %v2135
      %v2221 = vadd.f32 %v1941, %v2138
      %v2222 = vadd.f32 %v1942, %v2140
      %v2223 = vadd.f32 %v1943, %v2143
      %v2224 = vadd.f32 %v1944, %v2145
      %v2225 = vadd.f32 %v1945, %v2148
      %v2226 = vadd.f32 %v1946, %v2150
      %v2227 = vadd.f32 %v1947, %v2153
      %v2228 = vadd.f32 %v1948, %v2155
      %v2229 = vadd.f32 %v1949, %v2158
      %v2230 = vadd.f32 %v1950, %v2160
      %v2231 = vadd.f32 %v1951, %v2163
      %v2232 = vadd.f32 %v1952, %v2165
      %v2233 = vadd.f32 %v1953, %v2168
      %v2234 = vadd.f32 %v1954, %v2170
      %vm2235 = vcmask 523264
      %v2236 = vsel %vm2235, %v2203, 0.0
      %2237 = vadd.xlane.f32.xlu0 %v2236
      %v2238 = vpop.xlane.xlu0 %2237
      %v2239 = vsel %vm2235, %v2204, 0.0
      %2240 = vadd.xlane.f32.xlu0 %v2239
      %v2241 = vpop.xlane.xlu0 %2240
      %v2242 = vsel %vm2235, %v2205, 0.0
      %2243 = vadd.xlane.f32.xlu0 %v2242
      %v2244 = vpop.xlane.xlu0 %2243
      %v2245 = vsel %vm2235, %v2206, 0.0
      %2246 = vadd.xlane.f32.xlu0 %v2245
      %v2247 = vpop.xlane.xlu0 %2246
      %v2248 = vsel %vm2235, %v2207, 0.0
      %2249 = vadd.xlane.f32.xlu0 %v2248
      %v2250 = vpop.xlane.xlu0 %2249
      %v2251 = vsel %vm2235, %v2208, 0.0
      %2252 = vadd.xlane.f32.xlu0 %v2251
      %v2253 = vpop.xlane.xlu0 %2252
      %v2254 = vsel %vm2235, %v2209, 0.0
      %2255 = vadd.xlane.f32.xlu0 %v2254
      %v2256 = vpop.xlane.xlu0 %2255
      %v2257 = vsel %vm2235, %v2210, 0.0
      %2258 = vadd.xlane.f32.xlu0 %v2257
      %v2259 = vpop.xlane.xlu0 %2258
      %v2260 = vsel %vm2235, %v2211, 0.0
      %2261 = vadd.xlane.f32.xlu0 %v2260
      %v2262 = vpop.xlane.xlu0 %2261
      %v2263 = vsel %vm2235, %v2212, 0.0
      %2264 = vadd.xlane.f32.xlu0 %v2263
      %v2265 = vpop.xlane.xlu0 %2264
      %v2266 = vsel %vm2235, %v2213, 0.0
      %2267 = vadd.xlane.f32.xlu0 %v2266
      %v2268 = vpop.xlane.xlu0 %2267
      %v2269 = vsel %vm2235, %v2214, 0.0
      %2270 = vadd.xlane.f32.xlu0 %v2269
      %v2271 = vpop.xlane.xlu0 %2270
      %v2272 = vsel %vm2235, %v2215, 0.0
      %2273 = vadd.xlane.f32.xlu0 %v2272
      %v2274 = vpop.xlane.xlu0 %2273
      %v2275 = vsel %vm2235, %v2216, 0.0
      %2276 = vadd.xlane.f32.xlu0 %v2275
      %v2277 = vpop.xlane.xlu0 %2276
      %v2278 = vsel %vm2235, %v2217, 0.0
      %2279 = vadd.xlane.f32.xlu0 %v2278
      %v2280 = vpop.xlane.xlu0 %2279
      %v2281 = vsel %vm2235, %v2218, 0.0
      %2282 = vadd.xlane.f32.xlu0 %v2281
      %v2283 = vpop.xlane.xlu0 %2282
      %v2284 = vsel %vm2235, %v2219, 0.0
      %2285 = vadd.xlane.f32.xlu0 %v2284
      %v2286 = vpop.xlane.xlu0 %2285
      %v2287 = vsel %vm2235, %v2220, 0.0
      %2288 = vadd.xlane.f32.xlu0 %v2287
      %v2289 = vpop.xlane.xlu0 %2288
      %v2290 = vsel %vm2235, %v2221, 0.0
      %2291 = vadd.xlane.f32.xlu0 %v2290
      %v2292 = vpop.xlane.xlu0 %2291
      %v2293 = vsel %vm2235, %v2222, 0.0
      %2294 = vadd.xlane.f32.xlu0 %v2293
      %v2295 = vpop.xlane.xlu0 %2294
      %v2296 = vsel %vm2235, %v2223, 0.0
      %2297 = vadd.xlane.f32.xlu0 %v2296
      %v2298 = vpop.xlane.xlu0 %2297
      %v2299 = vsel %vm2235, %v2224, 0.0
      %2300 = vadd.xlane.f32.xlu0 %v2299
      %v2301 = vpop.xlane.xlu0 %2300
      %v2302 = vsel %vm2235, %v2225, 0.0
      %2303 = vadd.xlane.f32.xlu0 %v2302
      %v2304 = vpop.xlane.xlu0 %2303
      %v2305 = vsel %vm2235, %v2226, 0.0
      %2306 = vadd.xlane.f32.xlu0 %v2305
      %v2307 = vpop.xlane.xlu0 %2306
      %v2308 = vsel %vm2235, %v2227, 0.0
      %2309 = vadd.xlane.f32.xlu0 %v2308
      %v2310 = vpop.xlane.xlu0 %2309
      %v2311 = vsel %vm2235, %v2228, 0.0
      %2312 = vadd.xlane.f32.xlu0 %v2311
      %v2313 = vpop.xlane.xlu0 %2312
      %v2314 = vsel %vm2235, %v2229, 0.0
      %2315 = vadd.xlane.f32.xlu0 %v2314
      %v2316 = vpop.xlane.xlu0 %2315
      %v2317 = vsel %vm2235, %v2230, 0.0
      %2318 = vadd.xlane.f32.xlu0 %v2317
      %v2319 = vpop.xlane.xlu0 %2318
      %v2320 = vsel %vm2235, %v2231, 0.0
      %2321 = vadd.xlane.f32.xlu0 %v2320
      %v2322 = vpop.xlane.xlu0 %2321
      %v2323 = vsel %vm2235, %v2232, 0.0
      %2324 = vadd.xlane.f32.xlu0 %v2323
      %v2325 = vpop.xlane.xlu0 %2324
      %v2326 = vsel %vm2235, %v2233, 0.0
      %2327 = vadd.xlane.f32.xlu0 %v2326
      %v2328 = vpop.xlane.xlu0 %2327
      %v2329 = vsel %vm2235, %v2234, 0.0
      %2330 = vadd.xlane.f32.xlu0 %v2329
      %v2331 = vpop.xlane.xlu0 %2330
      %v2332 = vsub.f32 0.0, %v2238
      %v2333 = vsub.f32 0.0, %v2241
      %v2334 = vsub.f32 0.0, %v2244
      %v2335 = vsub.f32 0.0, %v2247
      %v2336 = vsub.f32 0.0, %v2250
      %v2337 = vsub.f32 0.0, %v2253
      %v2338 = vsub.f32 0.0, %v2256
      %v2339 = vsub.f32 0.0, %v2259
      %v2340 = vsub.f32 0.0, %v2262
      %v2341 = vsub.f32 0.0, %v2265
      %v2342 = vsub.f32 0.0, %v2268
      %v2343 = vsub.f32 0.0, %v2271
      %v2344 = vsub.f32 0.0, %v2274
      %v2345 = vsub.f32 0.0, %v2277
      %v2346 = vsub.f32 0.0, %v2280
      %v2347 = vsub.f32 0.0, %v2283
      %v2348 = vsub.f32 0.0, %v2286
      %v2349 = vsub.f32 0.0, %v2289
      %v2350 = vsub.f32 0.0, %v2292
      %v2351 = vsub.f32 0.0, %v2295
      %v2352 = vsub.f32 0.0, %v2298
      %v2353 = vsub.f32 0.0, %v2301
      %v2354 = vsub.f32 0.0, %v2304
      %v2355 = vsub.f32 0.0, %v2307
      %v2356 = vsub.f32 0.0, %v2310
      %v2357 = vsub.f32 0.0, %v2313
      %v2358 = vsub.f32 0.0, %v2316
      %v2359 = vsub.f32 0.0, %v2319
      %v2360 = vsub.f32 0.0, %v2322
      %v2361 = vsub.f32 0.0, %v2325
      %v2362 = vsub.f32 0.0, %v2328
      %v2363 = vsub.f32 0.0, %v2331
      %v2364 = vmul.f32 %v2332, 1.442695
      %v2365 = vpow.pop %v2364
      %v2366 = vmul.f32 %v2333, 1.442695
      %v2367 = vpow.pop %v2366
      %v2368 = vmul.f32 %v2334, 1.442695
      %v2369 = vpow.pop %v2368
      %v2370 = vmul.f32 %v2335, 1.442695
      %v2371 = vpow.pop %v2370
      %v2372 = vmul.f32 %v2336, 1.442695
      %v2373 = vpow.pop %v2372
      %v2374 = vmul.f32 %v2337, 1.442695
      %v2375 = vpow.pop %v2374
      %v2376 = vmul.f32 %v2338, 1.442695
      %v2377 = vpow.pop %v2376
      %v2378 = vmul.f32 %v2339, 1.442695
      %v2379 = vpow.pop %v2378
      %v2380 = vmul.f32 %v2340, 1.442695
      %v2381 = vpow.pop %v2380
      %v2382 = vmul.f32 %v2341, 1.442695
      %v2383 = vpow.pop %v2382
      %v2384 = vmul.f32 %v2342, 1.442695
      %v2385 = vpow.pop %v2384
      %v2386 = vmul.f32 %v2343, 1.442695
      %v2387 = vpow.pop %v2386
      %v2388 = vmul.f32 %v2344, 1.442695
      %v2389 = vpow.pop %v2388
      %v2390 = vmul.f32 %v2345, 1.442695
      %v2391 = vpow.pop %v2390
      %v2392 = vmul.f32 %v2346, 1.442695
      %v2393 = vpow.pop %v2392
      %v2394 = vmul.f32 %v2347, 1.442695
      %v2395 = vpow.pop %v2394
      %v2396 = vmul.f32 %v2348, 1.442695
      %v2397 = vpow.pop %v2396
      %v2398 = vmul.f32 %v2349, 1.442695
      %v2399 = vpow.pop %v2398
      %v2400 = vmul.f32 %v2350, 1.442695
      %v2401 = vpow.pop %v2400
      %v2402 = vmul.f32 %v2351, 1.442695
      %v2403 = vpow.pop %v2402
      %v2404 = vmul.f32 %v2352, 1.442695
      %v2405 = vpow.pop %v2404
      %v2406 = vmul.f32 %v2353, 1.442695
      %v2407 = vpow.pop %v2406
      %v2408 = vmul.f32 %v2354, 1.442695
      %v2409 = vpow.pop %v2408
      %v2410 = vmul.f32 %v2355, 1.442695
      %v2411 = vpow.pop %v2410
      %v2412 = vmul.f32 %v2356, 1.442695
      %v2413 = vpow.pop %v2412
      %v2414 = vmul.f32 %v2357, 1.442695
      %v2415 = vpow.pop %v2414
      %v2416 = vmul.f32 %v2358, 1.442695
      %v2417 = vpow.pop %v2416
      %v2418 = vmul.f32 %v2359, 1.442695
      %v2419 = vpow.pop %v2418
      %v2420 = vmul.f32 %v2360, 1.442695
      %v2421 = vpow.pop %v2420
      %v2422 = vmul.f32 %v2361, 1.442695
      %v2423 = vpow.pop %v2422
      %v2424 = vmul.f32 %v2362, 1.442695
      %v2425 = vpow.pop %v2424
      %v2426 = vmul.f32 %v2363, 1.442695
      %v2427 = vpow.pop %v2426
      %v2428 = vadd.f32 %v2365, 1.0
      %v2429 = vadd.f32 %v2367, 1.0
      %v2430 = vadd.f32 %v2369, 1.0
      %v2431 = vadd.f32 %v2371, 1.0
      %v2432 = vadd.f32 %v2373, 1.0
      %v2433 = vadd.f32 %v2375, 1.0
      %v2434 = vadd.f32 %v2377, 1.0
      %v2435 = vadd.f32 %v2379, 1.0
      %v2436 = vadd.f32 %v2381, 1.0
      %v2437 = vadd.f32 %v2383, 1.0
      %v2438 = vadd.f32 %v2385, 1.0
      %v2439 = vadd.f32 %v2387, 1.0
      %v2440 = vadd.f32 %v2389, 1.0
      %v2441 = vadd.f32 %v2391, 1.0
      %v2442 = vadd.f32 %v2393, 1.0
      %v2443 = vadd.f32 %v2395, 1.0
      %v2444 = vadd.f32 %v2397, 1.0
      %v2445 = vadd.f32 %v2399, 1.0
      %v2446 = vadd.f32 %v2401, 1.0
      %v2447 = vadd.f32 %v2403, 1.0
      %v2448 = vadd.f32 %v2405, 1.0
      %v2449 = vadd.f32 %v2407, 1.0
      %v2450 = vadd.f32 %v2409, 1.0
      %v2451 = vadd.f32 %v2411, 1.0
      %v2452 = vadd.f32 %v2413, 1.0
      %v2453 = vadd.f32 %v2415, 1.0
      %v2454 = vadd.f32 %v2417, 1.0
      %v2455 = vadd.f32 %v2419, 1.0
      %v2456 = vadd.f32 %v2421, 1.0
      %v2457 = vadd.f32 %v2423, 1.0
      %v2458 = vadd.f32 %v2425, 1.0
      %v2459 = vadd.f32 %v2427, 1.0
      %v2460 = vrcp.pop %v2428
      %v2461 = vmul.f32 1.0, %v2460
      %v2462 = vrcp.pop %v2429
      %v2463 = vmul.f32 1.0, %v2462
      %v2464 = vrcp.pop %v2430
      %v2465 = vmul.f32 1.0, %v2464
      %v2466 = vrcp.pop %v2431
      %v2467 = vmul.f32 1.0, %v2466
      %v2468 = vrcp.pop %v2432
      %v2469 = vmul.f32 1.0, %v2468
      %v2470 = vrcp.pop %v2433
      %v2471 = vmul.f32 1.0, %v2470
      %v2472 = vrcp.pop %v2434
      %v2473 = vmul.f32 1.0, %v2472
      %v2474 = vrcp.pop %v2435
      %v2475 = vmul.f32 1.0, %v2474
      %v2476 = vrcp.pop %v2436
      %v2477 = vmul.f32 1.0, %v2476
      %v2478 = vrcp.pop %v2437
      %v2479 = vmul.f32 1.0, %v2478
      %v2480 = vrcp.pop %v2438
      %v2481 = vmul.f32 1.0, %v2480
      %v2482 = vrcp.pop %v2439
      %v2483 = vmul.f32 1.0, %v2482
      %v2484 = vrcp.pop %v2440
      %v2485 = vmul.f32 1.0, %v2484
      %v2486 = vrcp.pop %v2441
      %v2487 = vmul.f32 1.0, %v2486
      %v2488 = vrcp.pop %v2442
      %v2489 = vmul.f32 1.0, %v2488
      %v2490 = vrcp.pop %v2443
      %v2491 = vmul.f32 1.0, %v2490
      %v2492 = vrcp.pop %v2444
      %v2493 = vmul.f32 1.0, %v2492
      %v2494 = vrcp.pop %v2445
      %v2495 = vmul.f32 1.0, %v2494
      %v2496 = vrcp.pop %v2446
      %v2497 = vmul.f32 1.0, %v2496
      %v2498 = vrcp.pop %v2447
      %v2499 = vmul.f32 1.0, %v2498
      %v2500 = vrcp.pop %v2448
      %v2501 = vmul.f32 1.0, %v2500
      %v2502 = vrcp.pop %v2449
      %v2503 = vmul.f32 1.0, %v2502
      %v2504 = vrcp.pop %v2450
      %v2505 = vmul.f32 1.0, %v2504
      %v2506 = vrcp.pop %v2451
      %v2507 = vmul.f32 1.0, %v2506
      %v2508 = vrcp.pop %v2452
      %v2509 = vmul.f32 1.0, %v2508
      %v2510 = vrcp.pop %v2453
      %v2511 = vmul.f32 1.0, %v2510
      %v2512 = vrcp.pop %v2454
      %v2513 = vmul.f32 1.0, %v2512
      %v2514 = vrcp.pop %v2455
      %v2515 = vmul.f32 1.0, %v2514
      %v2516 = vrcp.pop %v2456
      %v2517 = vmul.f32 1.0, %v2516
      %v2518 = vrcp.pop %v2457
      %v2519 = vmul.f32 1.0, %v2518
      %v2520 = vrcp.pop %v2458
      %v2521 = vmul.f32 1.0, %v2520
      %v2522 = vrcp.pop %v2459
      %v2523 = vmul.f32 1.0, %v2522
      %vm2524 = vcmask 7168
      %2525 = vst.msk [vmem:[%s143] sm:$0xff] %vm2524, %v2461
      %2526 = vst.msk [vmem:[%s143 + $0x8] sm:$0xff] %vm2524, %v2463
      %2527 = vst.msk [vmem:[%s143 + $0x10] sm:$0xff] %vm2524, %v2465
      %2528 = vst.msk [vmem:[%s143 + $0x18] sm:$0xff] %vm2524, %v2467
      %2529 = vst.msk [vmem:[%s143 + $0x20] sm:$0xff] %vm2524, %v2469
      %2530 = vst.msk [vmem:[%s143 + $0x28] sm:$0xff] %vm2524, %v2471
      %2531 = vst.msk [vmem:[%s143 + $0x30] sm:$0xff] %vm2524, %v2473
      %2532 = vst.msk [vmem:[%s143 + $0x38] sm:$0xff] %vm2524, %v2475
      %2533 = vst.msk [vmem:[%s143 + $0x40] sm:$0xff] %vm2524, %v2477
      %2534 = vst.msk [vmem:[%s143 + $0x48] sm:$0xff] %vm2524, %v2479
      %2535 = vst.msk [vmem:[%s143 + $0x50] sm:$0xff] %vm2524, %v2481
      %2536 = vst.msk [vmem:[%s143 + $0x58] sm:$0xff] %vm2524, %v2483
      %2537 = vst.msk [vmem:[%s143 + $0x60] sm:$0xff] %vm2524, %v2485
      %2538 = vst.msk [vmem:[%s143 + $0x68] sm:$0xff] %vm2524, %v2487
      %2539 = vst.msk [vmem:[%s143 + $0x70] sm:$0xff] %vm2524, %v2489
      %2540 = vst.msk [vmem:[%s143 + $0x78] sm:$0xff] %vm2524, %v2491
      %2541 = vst.msk [vmem:[%s143 + $0x80] sm:$0xff] %vm2524, %v2493
      %2542 = vst.msk [vmem:[%s143 + $0x88] sm:$0xff] %vm2524, %v2495
      %2543 = vst.msk [vmem:[%s143 + $0x90] sm:$0xff] %vm2524, %v2497
      %2544 = vst.msk [vmem:[%s143 + $0x98] sm:$0xff] %vm2524, %v2499
      %2545 = vst.msk [vmem:[%s143 + $0xa0] sm:$0xff] %vm2524, %v2501
      %2546 = vst.msk [vmem:[%s143 + $0xa8] sm:$0xff] %vm2524, %v2503
      %2547 = vst.msk [vmem:[%s143 + $0xb0] sm:$0xff] %vm2524, %v2505
      %2548 = vst.msk [vmem:[%s143 + $0xb8] sm:$0xff] %vm2524, %v2507
      %2549 = vst.msk [vmem:[%s143 + $0xc0] sm:$0xff] %vm2524, %v2509
      %2550 = vst.msk [vmem:[%s143 + $0xc8] sm:$0xff] %vm2524, %v2511
      %2551 = vst.msk [vmem:[%s143 + $0xd0] sm:$0xff] %vm2524, %v2513
      %2552 = vst.msk [vmem:[%s143 + $0xd8] sm:$0xff] %vm2524, %v2515
      %2553 = vst.msk [vmem:[%s143 + $0xe0] sm:$0xff] %vm2524, %v2517
      %2554 = vst.msk [vmem:[%s143 + $0xe8] sm:$0xff] %vm2524, %v2519
      %2555 = vst.msk [vmem:[%s143 + $0xf0] sm:$0xff] %vm2524, %v2521
      %2556 = vst.msk [vmem:[%s143 + $0xf8] sm:$0xff] %vm2524, %v2523
      %p2557 = scmp.lt.s32.totalorder %s13, 1
      %s2558 = scalar_select %p2557, %s13, 1
      %s2559 = smul.addr %s2558, 32
      %s2560 = smul.addr %s2559, 8
      %s2561 = scalar_lea.vmem %s2, %s2560
      // Predicated region
      $region29: #{to_gray_forward.1} parent=27 // pred_check
        %p2562 = pneg %p78
      $region30: #{to_gray_forward.1} parent=27 // pred_check_branch
        %2564 = sbr.rel (%p2562) target = $region32
      $region31: #{to_gray_forward.1} parent=27 // pred_region
        _
      $region32: #{to_gray_forward.1} parent=27 // pred_fallthru
        _
    $region28: #{to_gray_forward.1} parent=5 // pred_fallthru
      _
    %p2565 = scmp.le.s32.totalorder 2, %s8
    // Predicated region
    $region33: #{to_gray_forward.1} parent=5 // pred_check
      %p2566 = pneg %p2565
    $region34: #{to_gray_forward.1} parent=5 // pred_check_branch
      %2568 = sbr.rel (%p2566) target = $region36
    $region35: #{to_gray_forward.1} parent=5 // pred_region
      %s2569 = ssub.s32 %s8, 2
      // Predicated region
      $region37: #{to_gray_forward.1} parent=35 // pred_check
        %p2570 = pneg %p84
      $region38: #{to_gray_forward.1} parent=35 // pred_check_branch
        %2572 = sbr.rel (%p2570) target = $region40
      $region39: #{to_gray_forward.1} parent=35 // pred_region
        %p2573 = scmp.lt.s32.totalorder %s14, 1
        %s2574 = scalar_select %p2573, %s14, 1
        %s2575 = smul.addr %s2574, 32
        %s2576 = smul.addr %s2575, 8
        %s2577 = scalar_lea.vmem %s2, %s2576
      $region40: #{to_gray_forward.1} parent=35 // pred_fallthru
        _
    $region36: #{to_gray_forward.1} parent=5 // pred_fallthru
      _
  $region6: #{to_gray_forward.1} parent=0 // loop_footer
    %s12 = sadd.s32 1, %s8
  $region7: #{to_gray_forward.1} parent=0 // loop_footer_branch
    %7 = sbr.rel target = $region3
  $region8: #{to_gray_forward.1} parent=0 // loop_exit
    _

</llo_original>
